<compile_context>
chip_gen: v7x
topology: tpu7x:2x2x1
jax: 0.10.0
libtpu: 0.0.40
codegen_flags: <defaults>
</compile_context>

<pallas_src>
import functools
import math

import jax
import jax.numpy as jnp
from jax import lax
from jax.experimental import pallas as pl
from jax.experimental.pallas import tpu as pltpu


APPROX_GELU = False   # True -> tanh-approx GELU on the EUP (small numeric delta vs nn.GELU())
_LN_EPS = 1e-5


# ----------------------------------------------------------------------------
# helpers
# ----------------------------------------------------------------------------
def _round_up(x, m):
    return ((x + m - 1) // m) * m


def _gelu(x, approx):
    if approx:
        # tanh-approx GELU runs on the EUP (otherwise idle VLIW slot).
        c = math.sqrt(2.0 / math.pi)
        return 0.5 * x * (1.0 + jnp.tanh(c * (x + 0.044715 * x * x * x)))
    # Exact erf GELU matches torch.nn.GELU().
    return 0.5 * x * (1.0 + lax.erf(x * (1.0 / math.sqrt(2.0))))


def _layernorm_epilogue(y, gamma, beta, n_valid):
    """LayerNorm over the first n_valid columns of a zero-padded f32 block."""
    nout_p = y.shape[-1]
    inv_n = 1.0 / float(n_valid)
    # Padded output columns are exactly zero (W3/b3 padding is zero-initialized
    # in init_*_params), so the padded-width sum equals the real-column sum —
    # no mask needed for the mean.
    mean = jnp.sum(y, axis=-1, keepdims=True) * inv_n
    centered = y - mean
    if n_valid != nout_p:
        mask = lax.broadcasted_iota(jnp.int32, (1, nout_p), 1) < n_valid
        centered = jnp.where(mask, centered, 0.0)
    var = jnp.sum(centered * centered, axis=-1, keepdims=True) * inv_n
    # gamma/beta padding is zero, so padded output columns stay exactly zero.
    return centered * lax.rsqrt(var + _LN_EPS) * gamma + beta


def _pick_tile_m(M, tile_m):
    # Large tiles keep the MXU full; >=2 grid steps when rows permit so the
    # "parallel" axis can shard across v7x's two TensorCores; never below 128
    # rows; 16-row alignment for bf16 sublane packing.
    tm = min(int(tile_m), max(128, _round_up(-(-M // 2), 16)), _round_up(M, 16))
    return _round_up(tm, 16)


@functools.lru_cache(maxsize=1)
def _vmem_cap_bytes():
    kind = jax.devices()[0].device_kind.lower()
    if "v7" in kind:
        return 56 << 20     # 64 MiB physical VMEM per core on v7x: leave scratch headroom
    return 100 << 20        # v5e / v6e: 128 MiB physical


def _vmem_limit_bytes(in_block_bytes, out_block_bytes, interm_bytes):
    need = 2 * (in_block_bytes + out_block_bytes) + interm_bytes   # double-buffered blocks
    need = (need * 3) // 2 + (2 << 20)                             # compiler scratch / spill headroom
    return max(min(int(need), _vmem_cap_bytes()), 32 << 20)


# ----------------------------------------------------------------------------
# Pallas kernels
# ----------------------------------------------------------------------------
def _mlp_core(x_ref, w1_ref, b1_ref, w2_ref, b2_ref, w3_ref, b3_ref, approx):
    bf16 = jnp.bfloat16
    x = x_ref[...].astype(bf16)                       # cast in-kernel (no wrapper pass)
    h = jnp.dot(x, w1_ref[...], preferred_element_type=jnp.float32) + b1_ref[...]
    h = _gelu(h, approx).astype(bf16)
    h = jnp.dot(h, w2_ref[...], preferred_element_type=jnp.float32) + b2_ref[...]
    h = _gelu(h, approx).astype(bf16)
    return jnp.dot(h, w3_ref[...], preferred_element_type=jnp.float32) + b3_ref[...]


def _mlp_kernel(x_ref, w1_ref, b1_ref, w2_ref, b2_ref, w3_ref, b3_ref, o_ref,
                *, approx):
    y = _mlp_core(x_ref, w1_ref, b1_ref, w2_ref, b2_ref, w3_ref, b3_ref, approx)
    o_ref[...] = y.astype(o_ref.dtype)


def _mlpnorm_kernel(x_ref, w1_ref, b1_ref, w2_ref, b2_ref, w3_ref, b3_ref,
                    gamma_ref, beta_ref, o_ref, *, n_valid, approx):
    y = _mlp_core(x_ref, w1_ref, b1_ref, w2_ref, b2_ref, w3_ref, b3_ref, approx)
    o_ref[...] = _layernorm_epilogue(y, gamma_ref[...], beta_ref[...],
                                     n_valid).astype(o_ref.dtype)


def _fused_block_kernel(x1_ref, x2_ref, x3_ref,
                        w1a_ref, w1b_ref, w1c_ref, b1_ref,
                        w2_ref, b2_ref, w3_ref, b3_ref,
                        gamma_ref, beta_ref, o_ref, *, n_valid, approx):
    """MLPnorm(concat([x1, x2, x3_broadcast], -1)) with the concat fused away.

    x1 (gathered nodes) / x2 (elementNode feats) / x3 (element feats) arrive as
    separate row-aligned tiles; W1 is pre-split so
        concat(x1,x2,x3) @ W1 == x1@W1a + x2@W1b + x3@W1c.
    """
    bf16 = jnp.bfloat16
    h = jnp.dot(x1_ref[...].astype(bf16), w1a_ref[...],
                preferred_element_type=jnp.float32)
    h = h + jnp.dot(x2_ref[...].astype(bf16), w1b_ref[...],
                    preferred_element_type=jnp.float32)
    h = h + jnp.dot(x3_ref[...].astype(bf16), w1c_ref[...],
                    preferred_element_type=jnp.float32)
    h = _gelu(h + b1_ref[...], approx).astype(bf16)
    h = jnp.dot(h, w2_ref[...], preferred_element_type=jnp.float32) + b2_ref[...]
    h = _gelu(h, approx).astype(bf16)
    y = jnp.dot(h, w3_ref[...], preferred_element_type=jnp.float32) + b3_ref[...]
    o_ref[...] = _layernorm_epilogue(y, gamma_ref[...], beta_ref[...],
                                     n_valid).astype(o_ref.dtype)


# ----------------------------------------------------------------------------
# wrappers
# ----------------------------------------------------------------------------
def mlp_forward(x, p, *, tile_m=256, out_dtype=jnp.float32, keep_padded_out=False):
    """Fused MLP(+LayerNorm) over rows of x (..., nin) or (..., nin_padded)."""
    nin, nout = p["nin"], p["nout"]
    nin_p, hid_p = p["w1"].shape
    nout_p = p["w3"].shape[1]
    lead = x.shape[:-1]
    feat = x.shape[-1]
    if feat not in (nin, nin_p):
        raise ValueError(f"bad feature dim {feat}, expected {nin} or {nin_p}")
    x2d = x.reshape(-1, feat)
    M = x2d.shape[0]
    tm = _pick_tile_m(M, tile_m)
    M_pad = _round_up(M, tm)
    if M_pad != M or feat != nin_p:
        # Pad only when strictly needed — already-aligned activations (the
        # common in-loop case) skip this extra HBM roundtrip.
        x2d = jnp.pad(x2d, ((0, M_pad - M), (0, nin_p - feat)))

    def const_spec(shape):
        # Constant index_map: the pipeline keeps the resident copy across steps.
        # TODO(synk): add pipeline_mode=pl.Buffered(1) once verified on the
        # target jaxlib (VMEM-only benefit, matters at large hidden).
        return pl.BlockSpec(shape, lambda i: (0, 0))

    in_specs = [pl.BlockSpec((tm, nin_p), lambda i: (i, 0)),
                const_spec((nin_p, hid_p)), const_spec((1, hid_p)),
                const_spec((hid_p, hid_p)), const_spec((1, hid_p)),
                const_spec((hid_p, nout_p)), const_spec((1, nout_p))]
    args = [x2d, p["w1"], p["b1"], p["w2"], p["b2"], p["w3"], p["b3"]]
    if p["layernorm"]:
        in_specs += [const_spec((1, nout_p)), const_spec((1, nout_p))]
        args += [p["gamma"], p["beta"]]
        kernel = functools.partial(_mlpnorm_kernel, n_valid=nout, approx=APPROX_GELU)
    else:
        kernel = functools.partial(_mlp_kernel, approx=APPROX_GELU)

    in_bytes = (tm * nin_p * x2d.dtype.itemsize
                + 2 * (nin_p * hid_p + hid_p * hid_p + hid_p * nout_p)
                + 4 * (2 * hid_p + 3 * nout_p))
    out_bytes = tm * nout_p * jnp.dtype(out_dtype).itemsize
    vmem = _vmem_limit_bytes(in_bytes, out_bytes, 3 * tm * hid_p * 4)

    out = pl.pallas_call(
        kernel,
        out_shape=jax.ShapeDtypeStruct((M_pad, nout_p), out_dtype),
        grid_spec=pltpu.PrefetchScalarGridSpec(
            num_scalar_prefetch=0,
            grid=(M_pad // tm,),
            in_specs=in_specs,
            out_specs=pl.BlockSpec((tm, nout_p), lambda i: (i, 0)),
        ),
        compiler_params=pltpu.CompilerParams(
            dimension_semantics=("parallel",),
            vmem_limit_bytes=vmem,
        ),
    )(*args)

    out = out[:M]
    if not keep_padded_out:
        out = out[:, :nout]
    return out.reshape(lead + (out.shape[-1],))


def fused_block_forward(x1, x2, x3, p, *, tile_m=256, out_dtype=jnp.bfloat16):
    """elemBlock / nodeBlock MLPnorm with the concat + elems broadcast fused.

    x1, x2: (B, maxNelem, Ne, Hp) corner-major gathered-node / element-node feats.
    x3:     (B, Ne, Hp) element feats, broadcast over corners via the index_map.
    Returns (B, maxNelem, Ne, nout_padded) in out_dtype (padding columns are 0).
    """
    B, maxNelem, Ne, Hp = x1.shape
    hid_p = p["w2"].shape[0]
    nout_p = p["w3"].shape[1]
    nout = p["nout"]

    te = _round_up(min(int(tile_m), _round_up(Ne, 16)), 16)
    Ne_pad = _round_up(Ne, te)
    if Ne_pad != Ne:
        pad_e = Ne_pad - Ne
        x1 = jnp.pad(x1, ((0, 0), (0, 0), (0, pad_e), (0, 0)))
        x2 = jnp.pad(x2, ((0, 0), (0, 0), (0, pad_e), (0, 0)))
        x3 = jnp.pad(x3, ((0, 0), (0, pad_e), (0, 0)))

    # Innermost grid axis = corner index m: the element-feature tile (b, j) is
    # revisited maxNelem consecutive steps, so its DMA is not re-issued.
    grid = (B, Ne_pad // te, maxNelem)
    row_spec = pl.BlockSpec((None, None, te, Hp), lambda b, j, m: (b, m, j, 0))
    elem_spec = pl.BlockSpec((None, te, Hp), lambda b, j, m: (b, j, 0))

    def const_spec(shape):
        return pl.BlockSpec(shape, lambda b, j, m: (0, 0))

    in_specs = [row_spec, row_spec, elem_spec,
                const_spec((Hp, hid_p)), const_spec((Hp, hid_p)), const_spec((Hp, hid_p)),
                const_spec((1, hid_p)),
                const_spec((hid_p, hid_p)), const_spec((1, hid_p)),
                const_spec((hid_p, nout_p)), const_spec((1, nout_p)),
                const_spec((1, nout_p)), const_spec((1, nout_p))]
    out_spec = pl.BlockSpec((None, None, te, nout_p), lambda b, j, m: (b, m, j, 0))

    kernel = functools.partial(_fused_block_kernel, n_valid=nout, approx=APPROX_GELU)

    in_bytes = (te * Hp * (x1.dtype.itemsize + x2.dtype.itemsize + x3.dtype.itemsize)
                + 2 * (3 * Hp * hid_p + hid_p * hid_p + hid_p * nout_p)
                + 4 * (2 * hid_p + 3 * nout_p))
    out_bytes = te * nout_p * jnp.dtype(out_dtype).itemsize
    vmem = _vmem_limit_bytes(in_bytes, out_bytes, 3 * te * hid_p * 4)

    out = pl.pallas_call(
        kernel,
        out_shape=jax.ShapeDtypeStruct((B, maxNelem, Ne_pad, nout_p), out_dtype),
        grid_spec=pltpu.PrefetchScalarGridSpec(
            num_scalar_prefetch=0,
            grid=grid,
            in_specs=in_specs,
            out_specs=out_spec,
        ),
        compiler_params=pltpu.CompilerParams(
            dimension_semantics=("parallel", "parallel", "arbitrary"),
            vmem_limit_bytes=vmem,
        ),
    )(x1, x2, x3, p["w1a"], p["w1b"], p["w1c"], p["b1"],
      p["w2"], p["b2"], p["w3"], p["b3"], p["gamma"], p["beta"])

    if Ne_pad != Ne:
        out = out[:, :, :Ne, :]
    return out


# ----------------------------------------------------------------------------
# parameters (zero-padded once, lane-dense, bf16 weights / f32 biases)
# ----------------------------------------------------------------------------
def _pad2(a, rows, cols):
    return jnp.pad(a, ((0, rows - a.shape[0]), (0, cols - a.shape[1])))


def _linear_init(kw, kb, fan_in, fan_out):
    bound = 1.0 / math.sqrt(fan_in)
    w = jax.random.uniform(kw, (fan_in, fan_out), jnp.float32, -bound, bound)
    b = jax.random.uniform(kb, (1, fan_out), jnp.float32, -bound, bound)
    return w, b


def init_mlp_params(key, nin, nout, hidden, *, layernorm):
    ks = jax.random.split(key, 6)
    w1, b1 = _linear_init(ks[0], ks[1], nin, hidden)
    w2, b2 = _linear_init(ks[2], ks[3], hidden, hidden)
    w3, b3 = _linear_init(ks[4], ks[5], hidden, nout)
    nin_p, hid_p, nout_p = (_round_up(nin, 128), _round_up(hidden, 128),
                            _round_up(nout, 128))
    p = {"w1": _pad2(w1, nin_p, hid_p).astype(jnp.bfloat16), "b1": _pad2(b1, 1, hid_p),
         "w2": _pad2(w2, hid_p, hid_p).astype(jnp.bfloat16), "b2": _pad2(b2, 1, hid_p),
         "w3": _pad2(w3, hid_p, nout_p).astype(jnp.bfloat16), "b3": _pad2(b3, 1, nout_p),
         "nin": nin, "nout": nout, "hidden": hidden, "layernorm": layernorm}
    if layernorm:
        p["gamma"] = _pad2(jnp.ones((1, nout), jnp.float32), 1, nout_p)
        p["beta"] = jnp.zeros((1, nout_p), jnp.float32)
    return p


def init_block_params(key, hidden):
    """MLPnorm(3*hidden -> hidden) with W1 pre-split into the concat slices."""
    nin = 3 * hidden
    ks = jax.random.split(key, 6)
    w1, b1 = _linear_init(ks[0], ks[1], nin, hidden)
    w2, b2 = _linear_init(ks[2], ks[3], hidden, hidden)
    w3, b3 = _linear_init(ks[4], ks[5], hidden, hidden)
    hp = _round_up(hidden, 128)
    return {
        "w1a": _pad2(w1[:hidden], hp, hp).astype(jnp.bfloat16),
        "w1b": _pad2(w1[hidden:2 * hidden], hp, hp).astype(jnp.bfloat16),
        "w1c": _pad2(w1[2 * hidden:], hp, hp).astype(jnp.bfloat16),
        "b1": _pad2(b1, 1, hp),
        "w2": _pad2(w2, hp, hp).astype(jnp.bfloat16), "b2": _pad2(b2, 1, hp),
        "w3": _pad2(w3, hp, hp).astype(jnp.bfloat16), "b3": _pad2(b3, 1, hp),
        "gamma": _pad2(jnp.ones((1, hidden), jnp.float32), 1, hp),
        "beta": jnp.zeros((1, hp), jnp.float32),
        "hidden": hidden, "nout": hidden,
    }


def init_graphnet_params(key, node_dim, elemNode_dim, element_dim,
                         out_dim, hidden_dim, nLayers):
    keys = iter(jax.random.split(key, 4 + 2 * nLayers))
    params = {
        "nLayers": nLayers,
        "hidden": hidden_dim,
        "hidden_p": _round_up(hidden_dim, 128),
        "nodeEncoder": init_mlp_params(next(keys), node_dim, hidden_dim, hidden_dim, layernorm=True),
        "elemNodeEncoder": init_mlp_params(next(keys), elemNode_dim, hidden_dim, hidden_dim, layernorm=True),
        "elemEncoder": init_mlp_params(next(keys), element_dim, hidden_dim, hidden_dim, layernorm=True),
        "elemBlks": [],
        "nodeBlks": [],
    }
    for _ in range(nLayers):
        params["elemBlks"].append(init_block_params(next(keys), hidden_dim))
        params["nodeBlks"].append(init_block_params(next(keys), hidden_dim))
    params["nodeDecoder"] = init_mlp_params(
        next(keys), hidden_dim, out_dim, hidden_dim, layernorm=False)
    return params


# ----------------------------------------------------------------------------
# graphNetV2 forward (glue shared between the Pallas path and the reference)
# ----------------------------------------------------------------------------
def _graphnet_core(params, nodes, elemNodes, elems, elemConn, mlp_apply, block_apply):
    B, Nn, _ = nodes.shape
    _, Ne, maxNelem, _ = elemNodes.shape
    Hp = params["hidden_p"]

    # Corner-major layout (B, maxNelem, Ne, ...): the per-element features align
    # row-for-row with the gathered/elemNode tiles, so the block kernel can share
    # them across corners via the index_map.  Only tiny tensors are re-ordered.
    elemNodes_cm = jnp.transpose(elemNodes, (0, 2, 1, 3))   # (B, maxNelem, Ne, Dn)
    elemConn_cm = jnp.transpose(elemConn, (0, 2, 1))         # (B, maxNelem, Ne)

    # Encoders: residual carrier states (nodes/elems) stay f32; the read-only
    # element-node features stay bf16 (they are re-read every layer).
    nodes_h = mlp_apply(nodes, params["nodeEncoder"], jnp.float32, True)
    elemNodes_h = mlp_apply(elemNodes_cm, params["elemNodeEncoder"], jnp.bfloat16, True)
    elems_h = mlp_apply(elems, params["elemEncoder"], jnp.float32, True)

    # torch pairs element-major-flattened MLP rows with a corner-major-flattened
    # scatter index (that mismatch is part of the original module's semantics).
    # Our interim rows are corner-major, so permute the (tiny) index instead.
    K = Ne * maxNelem
    j = jnp.arange(K)
    k_of_j = (j % Ne) * maxNelem + (j // Ne)
    idx_cm = elemConn_cm.reshape(B, K)   # == elemConn.permute(0,2,1).reshape(B,-1)
    scatter_idx = jnp.take(idx_cm, k_of_j, axis=1)

    batch_ix = jnp.arange(B)[:, None, None]
    for i in range(params["nLayers"]):
        # TODO(synk): the data-dependent gather and scatter-add stay as XLA ops;
        # a Pallas version needs manual data-dependent DMA gathers.
        gathered = nodes_h[batch_ix, elemConn_cm]            # (B, maxNelem, Ne, Hp)

        e_upd = block_apply(gathered, elemNodes_h, elems_h, params["elemBlks"][i])
        elems_h = elems_h + jnp.mean(e_upd.astype(jnp.float32), axis=1)

        # node block uses the UPDATED elems (same as the torch loop ordering)
        interim = block_apply(gathered, elemNodes_h, elems_h, params["nodeBlks"][i])
        vals = interim.reshape(B, K, Hp).astype(jnp.float32)
        agg = jax.vmap(
            lambda v, ix: jnp.zeros((Nn, Hp), jnp.float32).at[ix].add(v)
        )(vals, scatter_idx)
        nodes_h = nodes_h + agg

    return mlp_apply(nodes_h, params["nodeDecoder"], jnp.float32, False)


def graphnet_forward(params, nodes, elemNodes, elems, elemConn, *, tile_m=256):
    def mlp_apply(x, p, out_dtype, keep_padded):
        return mlp_forward(x, p, tile_m=tile_m, out_dtype=out_dtype,
                           keep_padded_out=keep_padded)

    def block_apply(x1, x2, x3, p):
        return fused_block_forward(x1, x2, x3, p, tile_m=tile_m)

    return _graphnet_core(params, nodes, elemNodes, elems, elemConn,
                          mlp_apply, block_apply)


# ----------------------------------------------------------------------------
# pure-JAX reference (same bf16-matmul / f32-accumulate precision recipe)
# ----------------------------------------------------------------------------
def mlp_reference(x, p, *, out_dtype=jnp.float32, keep_padded_out=False):
    nin, nout, hid = p["nin"], p["nout"], p["hidden"]
    nout_p = p["w3"].shape[1]
    xr = x[..., :nin].astype(jnp.bfloat16)
    w1, b1 = p["w1"][:nin, :hid], p["b1"][:, :hid]
    w2, b2 = p["w2"][:hid, :hid], p["b2"][:, :hid]
    w3, b3 = p["w3"][:hid, :nout], p["b3"][:, :nout]
    h = _gelu(jnp.dot(xr, w1, preferred_element_type=jnp.float32) + b1,
              APPROX_GELU).astype(jnp.bfloat16)
    h = _gelu(jnp.dot(h, w2, preferred_element_type=jnp.float32) + b2,
              APPROX_GELU).astype(jnp.bfloat16)
    y = jnp.dot(h, w3, preferred_element_type=jnp.float32) + b3
    if p["layernorm"]:
        mean = jnp.mean(y, axis=-1, keepdims=True)
        var = jnp.mean(jnp.square(y - mean), axis=-1, keepdims=True)
        y = (y - mean) * lax.rsqrt(var + _LN_EPS) * p["gamma"][:, :nout] + p["beta"][:, :nout]
    y = y.astype(out_dtype)
    if keep_padded_out and nout_p != nout:
        y = jnp.pad(y, [(0, 0)] * (y.ndim - 1) + [(0, nout_p - nout)])
    return y


def block_reference(x1, x2, x3, p, out_dtype=jnp.bfloat16):
    hid, nout = p["hidden"], p["nout"]
    nout_p = p["w3"].shape[1]
    bf = jnp.bfloat16
    h = jnp.dot(x1[..., :hid].astype(bf), p["w1a"][:hid, :hid],
                preferred_element_type=jnp.float32)
    h = h + jnp.dot(x2[..., :hid].astype(bf), p["w1b"][:hid, :hid],
                    preferred_element_type=jnp.float32)
    h3 = jnp.dot(x3[..., :hid].astype(bf), p["w1c"][:hid, :hid],
                 preferred_element_type=jnp.float32)
    h = h + h3[:, None, :, :] + p["b1"][:, :hid]
    h = _gelu(h, APPROX_GELU).astype(bf)
    h = _gelu(jnp.dot(h, p["w2"][:hid, :hid], preferred_element_type=jnp.float32)
              + p["b2"][:, :hid], APPROX_GELU).astype(bf)
    y = jnp.dot(h, p["w3"][:hid, :nout], preferred_element_type=jnp.float32) + p["b3"][:, :nout]
    mean = jnp.mean(y, axis=-1, keepdims=True)
    var = jnp.mean(jnp.square(y - mean), axis=-1, keepdims=True)
    y = (y - mean) * lax.rsqrt(var + _LN_EPS) * p["gamma"][:, :nout] + p["beta"][:, :nout]
    y = y.astype(out_dtype)
    if nout_p != nout:
        y = jnp.pad(y, [(0, 0)] * (y.ndim - 1) + [(0, nout_p - nout)])
    return y


def graphnet_reference(params, nodes, elemNodes, elems, elemConn):
    def mlp_apply(x, p, out_dtype, keep_padded):
        return mlp_reference(x, p, out_dtype=out_dtype, keep_padded_out=keep_padded)

    return _graphnet_core(params, nodes, elemNodes, elems, elemConn,
                          mlp_apply, block_reference)


# ----------------------------------------------------------------------------
# demo
# ----------------------------------------------------------------------------
if __name__ == "__main__":
    B, Nn, Ne, maxNelem = 2, 64, 32, 4
    node_dim, elemNode_dim, element_dim = 4, 3, 5
    out_dim, hidden_dim, nLayers = 4, 32, 2

    key = jax.random.PRNGKey(0)
    kn, ken, ke, kc, kp = jax.random.split(key, 5)
    nodes = jax.random.normal(kn, (B, Nn, node_dim), jnp.float32)
    elemNodes = jax.random.normal(ken, (B, Ne, maxNelem, elemNode_dim), jnp.float32)
    elems = jax.random.normal(ke, (B, Ne, element_dim), jnp.float32)
    elemConn = jax.random.randint(kc, (B, Ne, maxNelem), 0, Nn, dtype=jnp.int32)

    params = init_graphnet_params(kp, node_dim, elemNode_dim, element_dim,
                                  out_dim, hidden_dim, nLayers)

    out = graphnet_forward(params, nodes, elemNodes, elems, elemConn, tile_m=256)
    out = jax.block_until_ready(out)
    assert out.shape == (B, Nn, out_dim)

    ref = graphnet_reference(params, nodes, elemNodes, elems, elemConn)
    ref = jax.block_until_ready(ref)
    max_err = float(jnp.max(jnp.abs(out - ref)))
    assert jnp.allclose(out, ref, atol=2e-2, rtol=2e-2), (
        f"mismatch vs reference (max abs err {max_err})")

    print("KERNEL_OK")
</pallas_src>

<mosaic_0001>
module attributes {stable_mosaic.version = 11 : i64} {
  func.func @_mlpnorm_kernel(%arg0: i32, %arg1: memref<128x128xf32, #tpu.memory_space<vmem>>, %arg2: memref<128x128xbf16, #tpu.memory_space<vmem>>, %arg3: memref<1x128xf32, #tpu.memory_space<vmem>>, %arg4: memref<128x128xbf16, #tpu.memory_space<vmem>>, %arg5: memref<1x128xf32, #tpu.memory_space<vmem>>, %arg6: memref<128x128xbf16, #tpu.memory_space<vmem>>, %arg7: memref<1x128xf32, #tpu.memory_space<vmem>>, %arg8: memref<1x128xf32, #tpu.memory_space<vmem>>, %arg9: memref<1x128xf32, #tpu.memory_space<vmem>>, %arg10: memref<128x128xf32, #tpu.memory_space<vmem>>) attributes {dimension_semantics = [#tpu.dimension_semantics<parallel>], iteration_bounds = array<i64: 1>, scalar_prefetch = 0 : i64, scratch_operands = 0 : i64, tpu.core_type = #tpu.core_type<tc>, window_params = [{transform_indices = @transform_0, window_bounds = array<i64: 128, 128>}, {pipeline_mode = #tpu.pipeline_mode<synchronous>, transform_indices = @transform_1, window_bounds = array<i64: 128, 128>}, {pipeline_mode = #tpu.pipeline_mode<synchronous>, transform_indices = @transform_2, window_bounds = array<i64: 1, 128>}, {pipeline_mode = #tpu.pipeline_mode<synchronous>, transform_indices = @transform_3, window_bounds = array<i64: 128, 128>}, {pipeline_mode = #tpu.pipeline_mode<synchronous>, transform_indices = @transform_4, window_bounds = array<i64: 1, 128>}, {pipeline_mode = #tpu.pipeline_mode<synchronous>, transform_indices = @transform_5, window_bounds = array<i64: 128, 128>}, {pipeline_mode = #tpu.pipeline_mode<synchronous>, transform_indices = @transform_6, window_bounds = array<i64: 1, 128>}, {pipeline_mode = #tpu.pipeline_mode<synchronous>, transform_indices = @transform_7, window_bounds = array<i64: 1, 128>}, {pipeline_mode = #tpu.pipeline_mode<synchronous>, transform_indices = @transform_8, window_bounds = array<i64: 1, 128>}, {transform_indices = @transform_9, window_bounds = array<i64: 128, 128>}]} {
    %c0 = arith.constant 0 : index
    %c0_0 = arith.constant 0 : index
    %0 = vector.load %arg1[%c0, %c0_0] : memref<128x128xf32, #tpu.memory_space<vmem>>, vector<128x128xf32>
    %1 = arith.truncf %0 : vector<128x128xf32> to vector<128x128xbf16>
    %c0_1 = arith.constant 0 : index
    %c0_2 = arith.constant 0 : index
    %2 = vector.load %arg2[%c0_1, %c0_2] : memref<128x128xbf16, #tpu.memory_space<vmem>>, vector<128x128xbf16>
    %cst = arith.constant dense<0.000000e+00> : vector<128x128xf32>
    %3 = tpu.matmul %1, %2, %cst {dimension_numbers = #tpu.dot_dimension_numbers<[1], [0], [0], [1], [0, 0, 1, 1], [], []>} : vector<128x128xbf16>, vector<128x128xbf16>, vector<128x128xf32> -> vector<128x128xf32>
    %c0_3 = arith.constant 0 : index
    %c0_4 = arith.constant 0 : index
    %4 = vector.load %arg3[%c0_3, %c0_4] : memref<1x128xf32, #tpu.memory_space<vmem>>, vector<1x128xf32>
    %5 = vector.broadcast %4 : vector<1x128xf32> to vector<128x128xf32>
    %6 = arith.addf %3, %5 : vector<128x128xf32>
    %cst_5 = arith.constant 5.000000e-01 : f32
    %7 = vector.broadcast %cst_5 : f32 to vector<128x128xf32>
    %8 = arith.mulf %7, %6 : vector<128x128xf32>
    %cst_6 = arith.constant 0.707106769 : f32
    %9 = vector.broadcast %cst_6 : f32 to vector<128x128xf32>
    %10 = arith.mulf %6, %9 : vector<128x128xf32>
    %11 = math.erf %10 : vector<128x128xf32>
    %cst_7 = arith.constant 1.000000e+00 : f32
    %12 = vector.broadcast %cst_7 : f32 to vector<128x128xf32>
    %13 = arith.addf %12, %11 : vector<128x128xf32>
    %14 = arith.mulf %8, %13 : vector<128x128xf32>
    %15 = arith.truncf %14 : vector<128x128xf32> to vector<128x128xbf16>
    %c0_8 = arith.constant 0 : index
    %c0_9 = arith.constant 0 : index
    %16 = vector.load %arg4[%c0_8, %c0_9] : memref<128x128xbf16, #tpu.memory_space<vmem>>, vector<128x128xbf16>
    %cst_10 = arith.constant dense<0.000000e+00> : vector<128x128xf32>
    %17 = tpu.matmul %15, %16, %cst_10 {dimension_numbers = #tpu.dot_dimension_numbers<[1], [0], [0], [1], [0, 0, 1, 1], [], []>} : vector<128x128xbf16>, vector<128x128xbf16>, vector<128x128xf32> -> vector<128x128xf32>
    %c0_11 = arith.constant 0 : index
    %c0_12 = arith.constant 0 : index
    %18 = vector.load %arg5[%c0_11, %c0_12] : memref<1x128xf32, #tpu.memory_space<vmem>>, vector<1x128xf32>
    %19 = vector.broadcast %18 : vector<1x128xf32> to vector<128x128xf32>
    %20 = arith.addf %17, %19 : vector<128x128xf32>
    %cst_13 = arith.constant 5.000000e-01 : f32
    %21 = vector.broadcast %cst_13 : f32 to vector<128x128xf32>
    %22 = arith.mulf %21, %20 : vector<128x128xf32>
    %cst_14 = arith.constant 0.707106769 : f32
    %23 = vector.broadcast %cst_14 : f32 to vector<128x128xf32>
    %24 = arith.mulf %20, %23 : vector<128x128xf32>
    %25 = math.erf %24 : vector<128x128xf32>
    %cst_15 = arith.constant 1.000000e+00 : f32
    %26 = vector.broadcast %cst_15 : f32 to vector<128x128xf32>
    %27 = arith.addf %26, %25 : vector<128x128xf32>
    %28 = arith.mulf %22, %27 : vector<128x128xf32>
    %29 = arith.truncf %28 : vector<128x128xf32> to vector<128x128xbf16>
    %c0_16 = arith.constant 0 : index
    %c0_17 = arith.constant 0 : index
    %30 = vector.load %arg6[%c0_16, %c0_17] : memref<128x128xbf16, #tpu.memory_space<vmem>>, vector<128x128xbf16>
    %cst_18 = arith.constant dense<0.000000e+00> : vector<128x128xf32>
    %31 = tpu.matmul %29, %30, %cst_18 {dimension_numbers = #tpu.dot_dimension_numbers<[1], [0], [0], [1], [0, 0, 1, 1], [], []>} : vector<128x128xbf16>, vector<128x128xbf16>, vector<128x128xf32> -> vector<128x128xf32>
    %c0_19 = arith.constant 0 : index
    %c0_20 = arith.constant 0 : index
    %32 = vector.load %arg7[%c0_19, %c0_20] : memref<1x128xf32, #tpu.memory_space<vmem>>, vector<1x128xf32>
    %33 = vector.broadcast %32 : vector<1x128xf32> to vector<128x128xf32>
    %34 = arith.addf %31, %33 : vector<128x128xf32>
    %c0_21 = arith.constant 0 : index
    %c0_22 = arith.constant 0 : index
    %35 = vector.load %arg8[%c0_21, %c0_22] : memref<1x128xf32, #tpu.memory_space<vmem>>, vector<1x128xf32>
    %c0_23 = arith.constant 0 : index
    %c0_24 = arith.constant 0 : index
    %36 = vector.load %arg9[%c0_23, %c0_24] : memref<1x128xf32, #tpu.memory_space<vmem>>, vector<1x128xf32>
    %cst_25 = arith.constant dense<0.000000e+00> : vector<128xf32>
    %37 = vector.multi_reduction <add>, %34, %cst_25 [1] : vector<128x128xf32> to vector<128xf32>
    %38 = vector.shape_cast %37 : vector<128xf32> to vector<128x1xf32>
    %cst_26 = arith.constant 3.125000e-02 : f32
    %39 = vector.broadcast %cst_26 : f32 to vector<128x1xf32>
    %40 = arith.mulf %38, %39 : vector<128x1xf32>
    %41 = vector.broadcast %40 : vector<128x1xf32> to vector<128x128xf32>
    %42 = arith.subf %34, %41 : vector<128x128xf32>
    %43 = tpu.iota {dimensions = array<i32: 1>} : vector<1x128xi32>
    %c32_i32 = arith.constant 32 : i32
    %44 = vector.broadcast %c32_i32 : i32 to vector<1x128xi32>
    %45 = arith.cmpi slt, %43, %44 : vector<1x128xi32>
    %cst_27 = arith.constant 0.000000e+00 : f32
    %46 = vector.shape_cast %45 : vector<1x128xi1> to vector<1x128xi1>
    %47 = vector.broadcast %46 : vector<1x128xi1> to vector<128x128xi1>
    %48 = vector.broadcast %cst_27 : f32 to vector<128x128xf32>
    %49 = arith.select %47, %42, %48 : vector<128x128xi1>, vector<128x128xf32>
    %50 = arith.mulf %49, %49 : vector<128x128xf32>
    %cst_28 = arith.constant dense<0.000000e+00> : vector<128xf32>
    %51 = vector.multi_reduction <add>, %50, %cst_28 [1] : vector<128x128xf32> to vector<128xf32>
    %52 = vector.shape_cast %51 : vector<128xf32> to vector<128x1xf32>
    %cst_29 = arith.constant 3.125000e-02 : f32
    %53 = vector.broadcast %cst_29 : f32 to vector<128x1xf32>
    %54 = arith.mulf %52, %53 : vector<128x1xf32>
    %cst_30 = arith.constant 9.99999974E-6 : f32
    %55 = vector.broadcast %cst_30 : f32 to vector<128x1xf32>
    %56 = arith.addf %54, %55 : vector<128x1xf32>
    %57 = math.rsqrt %56 : vector<128x1xf32>
    %58 = vector.broadcast %57 : vector<128x1xf32> to vector<128x128xf32>
    %59 = arith.mulf %49, %58 : vector<128x128xf32>
    %60 = vector.broadcast %35 : vector<1x128xf32> to vector<128x128xf32>
    %61 = arith.mulf %59, %60 : vector<128x128xf32>
    %62 = vector.broadcast %36 : vector<1x128xf32> to vector<128x128xf32>
    %63 = arith.addf %61, %62 : vector<128x128xf32>
    %c0_31 = arith.constant 0 : index
    %c0_32 = arith.constant 0 : index
    %64 = vector.load %arg10[%c0_31, %c0_32] : memref<128x128xf32, #tpu.memory_space<vmem>>, vector<128x128xf32>
    tpu.vector_store %arg10[%c0_31, %c0_32], %63 {strides = array<i32>} : memref<128x128xf32, #tpu.memory_space<vmem>>, vector<128x128xf32>,
    return
  }
  func.func @transform_0(%arg0: i32) -> (i32, i32) {
    %c0_i32 = arith.constant 0 : i32
    %c0_i32_0 = arith.constant 0 : i32
    return %arg0, %c0_i32 : i32, i32
  }
  func.func @transform_1(%arg0: i32) -> (i32, i32) {
    %c0_i32 = arith.constant 0 : i32
    %c0_i32_0 = arith.constant 0 : i32
    %c0_i32_1 = arith.constant 0 : i32
    return %c0_i32, %c0_i32_0 : i32, i32
  }
  func.func @transform_2(%arg0: i32) -> (i32, i32) {
    %c0_i32 = arith.constant 0 : i32
    %c0_i32_0 = arith.constant 0 : i32
    %c0_i32_1 = arith.constant 0 : i32
    return %c0_i32, %c0_i32_0 : i32, i32
  }
  func.func @transform_3(%arg0: i32) -> (i32, i32) {
    %c0_i32 = arith.constant 0 : i32
    %c0_i32_0 = arith.constant 0 : i32
    %c0_i32_1 = arith.constant 0 : i32
    return %c0_i32, %c0_i32_0 : i32, i32
  }
  func.func @transform_4(%arg0: i32) -> (i32, i32) {
    %c0_i32 = arith.constant 0 : i32
    %c0_i32_0 = arith.constant 0 : i32
    %c0_i32_1 = arith.constant 0 : i32
    return %c0_i32, %c0_i32_0 : i32, i32
  }
  func.func @transform_5(%arg0: i32) -> (i32, i32) {
    %c0_i32 = arith.constant 0 : i32
    %c0_i32_0 = arith.constant 0 : i32
    %c0_i32_1 = arith.constant 0 : i32
    return %c0_i32, %c0_i32_0 : i32, i32
  }
  func.func @transform_6(%arg0: i32) -> (i32, i32) {
    %c0_i32 = arith.constant 0 : i32
    %c0_i32_0 = arith.constant 0 : i32
    %c0_i32_1 = arith.constant 0 : i32
    return %c0_i32, %c0_i32_0 : i32, i32
  }
  func.func @transform_7(%arg0: i32) -> (i32, i32) {
    %c0_i32 = arith.constant 0 : i32
    %c0_i32_0 = arith.constant 0 : i32
    %c0_i32_1 = arith.constant 0 : i32
    return %c0_i32, %c0_i32_0 : i32, i32
  }
  func.func @transform_8(%arg0: i32) -> (i32, i32) {
    %c0_i32 = arith.constant 0 : i32
    %c0_i32_0 = arith.constant 0 : i32
    %c0_i32_1 = arith.constant 0 : i32
    return %c0_i32, %c0_i32_0 : i32, i32
  }
  func.func @transform_9(%arg0: i32) -> (i32, i32) {
    %c0_i32 = arith.constant 0 : i32
    %c0_i32_0 = arith.constant 0 : i32
    return %arg0, %c0_i32 : i32, i32
  }
}

</mosaic_0001>

<llo_original>
// kernel: tpu_custom_call.1
$region0: #{tpu_custom_call.1}
  #allocation0 [shape = 'u32[]', space=smem, size = 0x4, offset = 0x4, fixed_abs, tag = 'smem constant byte address 0x4 - core index']
  #allocation1 [shape = 'u32[144,128]{1,0:T(1,128)}', space=vmem, size = 0x12000, scoped, tag = 'internal scratch']
  %s0 = inlined_call_operand.hbm [shape: f32[128,128], index: 0, kind: input, shape index: {}]
  %s1 = inlined_call_operand.hbm [shape: bf16[128,128], index: 1, kind: input, shape index: {}]
  %s2 = inlined_call_operand.vmem [shape: f32[1,128], index: 2, kind: input, shape index: {}]
  %s3 = inlined_call_operand.hbm [shape: bf16[128,128], index: 3, kind: input, shape index: {}]
  %s4 = inlined_call_operand.vmem [shape: f32[1,128], index: 4, kind: input, shape index: {}]
  %s5 = inlined_call_operand.hbm [shape: bf16[128,128], index: 5, kind: input, shape index: {}]
  %s6 = inlined_call_operand.vmem [shape: f32[1,128], index: 6, kind: input, shape index: {}]
  %s7 = inlined_call_operand.vmem [shape: f32[1,128], index: 7, kind: input, shape index: {}]
  %s8 = inlined_call_operand.vmem [shape: f32[1,128], index: 8, kind: input, shape index: {}]
  %s9 = inlined_call_operand.hbm [shape: f32[128,128], index: 9, kind: output, shape index: {}]
  %s10 = sld [smem:[#allocation0]]
  $region62: #{tpu_custom_call.1} parent=0
    _
  %s12 = ssub.s32 1, %s10
  %s13 = scalar_select 0, %s12, %s10
  $region1: #{tpu_custom_call.1} parent=0
    #allocation2 [shape = 'u8[65536]{0}', space=vmem, size = 0x10000, scoped, tag = 'input window, operand 0, single buffered']
    #allocation3 [shape = 's32[1]{0}', space=sflag, size = 0x4, scoped, tag = 'scoped memory for tpu_custom_call.1']
    #allocation4 [shape = 's32[1]{0}', space=sflag, size = 0x4, scoped, tag = 'scoped memory for tpu_custom_call.1']
    #allocation5 [shape = 'u8[32768]{0}', space=vmem, size = 0x8000, scoped, tag = 'input window, operand 1, single buffered']
    #allocation6 [shape = 's32[1]{0}', space=sflag, size = 0x4, scoped, tag = 'scoped memory for tpu_custom_call.1']
    #allocation7 [shape = 'u8[32768]{0}', space=vmem, size = 0x8000, scoped, tag = 'input window, operand 3, single buffered']
    #allocation8 [shape = 'u8[32768]{0}', space=vmem, size = 0x8000, scoped, tag = 'input window, operand 5, single buffered']
    #allocation9 [shape = 's32[1]{0}', space=sflag, size = 0x4, scoped, tag = 'scoped memory for tpu_custom_call.1']
    #allocation10 [shape = 'u8[65536]{0}', space=vmem, size = 0x10000, scoped, tag = 'output window, operand 0, single buffered']
    %14 = vsyncpa [#allocation3], 0
    %15 = vsyncpa [#allocation6], 0
    %16 = vsyncpa [#allocation9], 0
    %17 = vsyncpa [#allocation4], 0
    // Predicated region
    $region2: #{tpu_custom_call.1} parent=1 // pred_check
      _
    $region3: #{tpu_custom_call.1} parent=1 // pred_check_branch
      %19 = sbr.rel (0) target = $region5
    $region4: #{tpu_custom_call.1} parent=1 // pred_region
      %s21 = ssub.s32 2048, 2048
      %22 = vsyncadd [#allocation3], %s21
      %s23 = sshll.u32 [#allocation2], 4
      %s24 = int_to_ptr.vmem [resolvable:$true] %s23
      %29 = dma.hbm_to_vmem [thread:$0]  %s0, 2048, %s24, [#allocation3], 128, 128, 8
    $region5: #{tpu_custom_call.1} parent=1 // pred_fallthru
      _
    // Predicated region
    $region6: #{tpu_custom_call.1} parent=1 // pred_check
      _
    $region7: #{tpu_custom_call.1} parent=1 // pred_check_branch
      %31 = sbr.rel (0) target = $region9
    $region8: #{tpu_custom_call.1} parent=1 // pred_region
      %s33 = ssub.s32 1024, 1024
      %34 = vsyncadd [#allocation6], %s33
      %s35 = sshll.u32 [#allocation5], 4
      %s36 = int_to_ptr.vmem [resolvable:$true] %s35
      %41 = dma.hbm_to_vmem [thread:$0]  %s1, 1024, %s36, [#allocation6], 64, 64, 4
    $region9: #{tpu_custom_call.1} parent=1 // pred_fallthru
      _
    // Predicated region
    $region10: #{tpu_custom_call.1} parent=1 // pred_check
      _
    $region11: #{tpu_custom_call.1} parent=1 // pred_check_branch
      %43 = sbr.rel (0) target = $region13
    $region12: #{tpu_custom_call.1} parent=1 // pred_region
      _
    $region13: #{tpu_custom_call.1} parent=1 // pred_fallthru
      _
    // Predicated region
    $region14: #{tpu_custom_call.1} parent=1 // pred_check
      _
    $region15: #{tpu_custom_call.1} parent=1 // pred_check_branch
      %45 = sbr.rel (0) target = $region17
    $region16: #{tpu_custom_call.1} parent=1 // pred_region
      %s47 = ssub.s32 1024, 1024
      %48 = vsyncadd [#allocation6], %s47
      %s49 = sshll.u32 [#allocation7], 4
      %s50 = int_to_ptr.vmem [resolvable:$true] %s49
      %55 = dma.hbm_to_vmem [thread:$0]  %s3, 1024, %s50, [#allocation6], 64, 64, 4
    $region17: #{tpu_custom_call.1} parent=1 // pred_fallthru
      _
    // Predicated region
    $region18: #{tpu_custom_call.1} parent=1 // pred_check
      _
    $region19: #{tpu_custom_call.1} parent=1 // pred_check_branch
      %57 = sbr.rel (0) target = $region21
    $region20: #{tpu_custom_call.1} parent=1 // pred_region
      _
    $region21: #{tpu_custom_call.1} parent=1 // pred_fallthru
      _
    // Predicated region
    $region22: #{tpu_custom_call.1} parent=1 // pred_check
      _
    $region23: #{tpu_custom_call.1} parent=1 // pred_check_branch
      %59 = sbr.rel (0) target = $region25
    $region24: #{tpu_custom_call.1} parent=1 // pred_region
      %s61 = ssub.s32 1024, 1024
      %62 = vsyncadd [#allocation9], %s61
      %s63 = sshll.u32 [#allocation8], 4
      %s64 = int_to_ptr.vmem [resolvable:$true] %s63
      %69 = dma.hbm_to_vmem [thread:$0]  %s5, 1024, %s64, [#allocation9], 64, 64, 4
    $region25: #{tpu_custom_call.1} parent=1 // pred_fallthru
      _
    // Predicated region
    $region26: #{tpu_custom_call.1} parent=1 // pred_check
      _
    $region27: #{tpu_custom_call.1} parent=1 // pred_check_branch
      %71 = sbr.rel (0) target = $region29
    $region28: #{tpu_custom_call.1} parent=1 // pred_region
      _
    $region29: #{tpu_custom_call.1} parent=1 // pred_fallthru
      _
    // Predicated region
    $region30: #{tpu_custom_call.1} parent=1 // pred_check
      _
    $region31: #{tpu_custom_call.1} parent=1 // pred_check_branch
      %73 = sbr.rel (0) target = $region33
    $region32: #{tpu_custom_call.1} parent=1 // pred_region
      _
    $region33: #{tpu_custom_call.1} parent=1 // pred_fallthru
      _
    // Predicated region
    $region34: #{tpu_custom_call.1} parent=1 // pred_check
      _
    $region35: #{tpu_custom_call.1} parent=1 // pred_check_branch
      %75 = sbr.rel (0) target = $region37
    $region36: #{tpu_custom_call.1} parent=1 // pred_region
      _
    $region37: #{tpu_custom_call.1} parent=1 // pred_fallthru
      _
    // Predicated region
    $region38: #{tpu_custom_call.1} parent=1 // pred_check
      _
    $region39: #{tpu_custom_call.1} parent=1 // pred_check_branch
      %77 = sbr.rel (0) target = $region41
    $region40: #{tpu_custom_call.1} parent=1 // pred_region
      %78 = dma.done [#allocation3], 2048
    $region41: #{tpu_custom_call.1} parent=1 // pred_fallthru
      _
    // Predicated region
    $region42: #{tpu_custom_call.1} parent=1 // pred_check
      _
    $region43: #{tpu_custom_call.1} parent=1 // pred_check_branch
      %80 = sbr.rel (0) target = $region45
    $region44: #{tpu_custom_call.1} parent=1 // pred_region
      %81 = dma.done [#allocation6], 1024
    $region45: #{tpu_custom_call.1} parent=1 // pred_fallthru
      _
    // Predicated region
    $region46: #{tpu_custom_call.1} parent=1 // pred_check
      _
    $region47: #{tpu_custom_call.1} parent=1 // pred_check_branch
      %83 = sbr.rel (0) target = $region49
    $region48: #{tpu_custom_call.1} parent=1 // pred_region
      %84 = dma.done [#allocation6], 1024
    $region49: #{tpu_custom_call.1} parent=1 // pred_fallthru
      _
    // Predicated region
    $region50: #{tpu_custom_call.1} parent=1 // pred_check
      _
    $region51: #{tpu_custom_call.1} parent=1 // pred_check_branch
      %86 = sbr.rel (0) target = $region53
    $region52: #{tpu_custom_call.1} parent=1 // pred_region
      %87 = dma.done [#allocation9], 1024
    $region53: #{tpu_custom_call.1} parent=1 // pred_fallthru
      _
    %v89 = vld [vmem:[#allocation2] sm:$0xff]
    %v90 = vld [vmem:[#allocation2 + $0x8] sm:$0xff]
    %v91 = vld [vmem:[#allocation2 + $0x10] sm:$0xff]
    %v92 = vld [vmem:[#allocation2 + $0x18] sm:$0xff]
    %v93 = vld [vmem:[#allocation2 + $0x20] sm:$0xff]
    %v94 = vld [vmem:[#allocation2 + $0x28] sm:$0xff]
    %v95 = vld [vmem:[#allocation2 + $0x30] sm:$0xff]
    %v96 = vld [vmem:[#allocation2 + $0x38] sm:$0xff]
    %v97 = vld [vmem:[#allocation2 + $0x40] sm:$0xff]
    %v98 = vld [vmem:[#allocation2 + $0x48] sm:$0xff]
    %v99 = vld [vmem:[#allocation2 + $0x50] sm:$0xff]
    %v100 = vld [vmem:[#allocation2 + $0x58] sm:$0xff]
    %v101 = vld [vmem:[#allocation2 + $0x60] sm:$0xff]
    %v102 = vld [vmem:[#allocation2 + $0x68] sm:$0xff]
    %v103 = vld [vmem:[#allocation2 + $0x70] sm:$0xff]
    %v104 = vld [vmem:[#allocation2 + $0x78] sm:$0xff]
    %v105 = vpack.c.bf16 %v90, %v89
    %v106 = vpack.c.bf16 %v92, %v91
    %v107 = vpack.c.bf16 %v94, %v93
    %v108 = vpack.c.bf16 %v96, %v95
    %v109 = vpack.c.bf16 %v98, %v97
    %v110 = vpack.c.bf16 %v100, %v99
    %v111 = vpack.c.bf16 %v102, %v101
    %v112 = vpack.c.bf16 %v104, %v103
    %v113 = vld [vmem:[#allocation5] sm:$0xf]
    %v114 = vld [vmem:[#allocation5 + $0x4] sm:$0xf]
    %v115 = vld [vmem:[#allocation5 + $0x8] sm:$0xf]
    %v116 = vld [vmem:[#allocation5 + $0xc] sm:$0xf]
    %v117 = vld [vmem:[#allocation5 + $0x10] sm:$0xf]
    %v118 = vld [vmem:[#allocation5 + $0x14] sm:$0xf]
    %v119 = vld [vmem:[#allocation5 + $0x18] sm:$0xf]
    %v120 = vld [vmem:[#allocation5 + $0x1c] sm:$0xf]
    %v121 = vld [vmem:[#allocation5 + $0x20] sm:$0xf]
    %v122 = vld [vmem:[#allocation5 + $0x24] sm:$0xf]
    %v123 = vld [vmem:[#allocation5 + $0x28] sm:$0xf]
    %v124 = vld [vmem:[#allocation5 + $0x2c] sm:$0xf]
    %v125 = vld [vmem:[#allocation5 + $0x30] sm:$0xf]
    %v126 = vld [vmem:[#allocation5 + $0x34] sm:$0xf]
    %v127 = vld [vmem:[#allocation5 + $0x38] sm:$0xf]
    %v128 = vld [vmem:[#allocation5 + $0x3c] sm:$0xf]
    %v129 = vld [vmem:[%s2] sm:$0x1]
    %v131 = vlaneseq
    %v132 = vshrl.u32 %v131, 7
    %v133 = vsub.s32 0, %v132
    %v134 = vrot.slane %v129, %v133
    %v152 = vunpack.c.l.b16 %v113
    %v153 = vunpack.c.l.b16 %v114
    %v154 = vunpack.c.l.b16 %v115
    %v155 = vunpack.c.l.b16 %v116
    %v156 = vunpack.c.l.b16 %v117
    %v157 = vunpack.c.l.b16 %v118
    %v158 = vunpack.c.l.b16 %v119
    %v159 = vunpack.c.l.b16 %v120
    %v160 = vunpack.c.l.b16 %v121
    %v161 = vunpack.c.l.b16 %v122
    %v162 = vunpack.c.l.b16 %v123
    %v163 = vunpack.c.l.b16 %v124
    %v164 = vunpack.c.l.b16 %v125
    %v165 = vunpack.c.l.b16 %v126
    %v166 = vunpack.c.l.b16 %v127
    %v167 = vunpack.c.l.b16 %v128
    %v168 = vpack.c.b16 %v153, %v152
    %v169 = vpack.c.b16 %v155, %v154
    %v170 = vpack.c.b16 %v157, %v156
    %v171 = vpack.c.b16 %v159, %v158
    %v172 = vpack.c.b16 %v161, %v160
    %v173 = vpack.c.b16 %v163, %v162
    %v174 = vpack.c.b16 %v165, %v164
    %v175 = vpack.c.b16 %v167, %v166
    %184 = vmatprep.subr.bf16.mxu0 0
    %185 = vmatpush1.bf16.msra.mxu0 %v168
    %186 = vmatprep.subr.bf16.mxu0 0
    %187 = vmatpush1.bf16.msra.mxu0 %v169
    %188 = vmatprep.subr.bf16.mxu0 0
    %189 = vmatpush1.bf16.msra.mxu0 %v170
    %190 = vmatprep.subr.bf16.mxu0 0
    %191 = vmatpush1.bf16.msra.mxu0 %v171
    %192 = vmatprep.subr.bf16.mxu0 0
    %193 = vmatpush1.bf16.msra.mxu0 %v172
    %194 = vmatprep.subr.bf16.mxu0 0
    %195 = vmatpush1.bf16.msra.mxu0 %v173
    %196 = vmatprep.subr.bf16.mxu0 0
    %197 = vmatpush1.bf16.msra.mxu0 %v174
    %198 = vmatprep.subr.bf16.mxu0 0
    %199 = vmatpush1.bf16.msra.mxu0 %v175
    %200 = vmatprep.subr.bf16.mxu0 0
    %201 = vmatpush1.bf16.msra.mxu0 0
    %202 = vmatprep.subr.bf16.mxu0 0
    %203 = vmatpush1.bf16.msra.mxu0 0
    %204 = vmatprep.subr.bf16.mxu0 0
    %205 = vmatpush1.bf16.msra.mxu0 0
    %206 = vmatprep.subr.bf16.mxu0 0
    %207 = vmatpush1.bf16.msra.mxu0 0
    %208 = vmatprep.subr.bf16.mxu0 0
    %209 = vmatpush1.bf16.msra.mxu0 0
    %210 = vmatprep.subr.bf16.mxu0 0
    %211 = vmatpush1.bf16.msra.mxu0 0
    %212 = vmatprep.subr.bf16.mxu0 0
    %213 = vmatpush1.bf16.msra.mxu0 0
    %214 = vmatprep.subr.bf16.mxu0 0
    %215 = vmatpush1.bf16.msra.mxu0 0
    %216 = vmatprep.mubr.bf16.mxu0 0
    %217 = vmatmul.mubr.bf16.gmra.mrb[0].mxu0 %v105
    %v218 = vpop.f32.mrb[0].mxu0
    %v219 = vadd.f32 %v134, %v218
    %v220 = vpop.f32.mrb[0].mxu0
    %v221 = vpop.f32.mrb[0].mxu0
    %v222 = vadd.f32 %v134, %v221
    %v223 = vpop.f32.mrb[0].mxu0
    %224 = vmatprep.mubr.bf16.mxu0 0
    %225 = vmatmul.mubr.bf16.gmra.mrb[0].mxu0 %v106
    %v226 = vpop.f32.mrb[0].mxu0
    %v227 = vadd.f32 %v134, %v226
    %v228 = vpop.f32.mrb[0].mxu0
    %v229 = vpop.f32.mrb[0].mxu0
    %v230 = vadd.f32 %v134, %v229
    %v231 = vpop.f32.mrb[0].mxu0
    %232 = vmatprep.mubr.bf16.mxu0 0
    %233 = vmatmul.mubr.bf16.gmra.mrb[0].mxu0 %v107
    %v234 = vpop.f32.mrb[0].mxu0
    %v235 = vadd.f32 %v134, %v234
    %v236 = vpop.f32.mrb[0].mxu0
    %v237 = vpop.f32.mrb[0].mxu0
    %v238 = vadd.f32 %v134, %v237
    %v239 = vpop.f32.mrb[0].mxu0
    %240 = vmatprep.mubr.bf16.mxu0 0
    %241 = vmatmul.mubr.bf16.gmra.mrb[0].mxu0 %v108
    %v242 = vpop.f32.mrb[0].mxu0
    %v243 = vadd.f32 %v134, %v242
    %v244 = vpop.f32.mrb[0].mxu0
    %v245 = vpop.f32.mrb[0].mxu0
    %v246 = vadd.f32 %v134, %v245
    %v247 = vpop.f32.mrb[0].mxu0
    %248 = vmatprep.mubr.bf16.mxu0 0
    %249 = vmatmul.mubr.bf16.gmra.mrb[0].mxu0 %v109
    %v250 = vpop.f32.mrb[0].mxu0
    %v251 = vadd.f32 %v134, %v250
    %v252 = vpop.f32.mrb[0].mxu0
    %v253 = vpop.f32.mrb[0].mxu0
    %v254 = vadd.f32 %v134, %v253
    %v255 = vpop.f32.mrb[0].mxu0
    %256 = vmatprep.mubr.bf16.mxu0 0
    %257 = vmatmul.mubr.bf16.gmra.mrb[0].mxu0 %v110
    %v258 = vpop.f32.mrb[0].mxu0
    %v259 = vadd.f32 %v134, %v258
    %v260 = vpop.f32.mrb[0].mxu0
    %v261 = vpop.f32.mrb[0].mxu0
    %v262 = vadd.f32 %v134, %v261
    %v263 = vpop.f32.mrb[0].mxu0
    %264 = vmatprep.mubr.bf16.mxu0 0
    %265 = vmatmul.mubr.bf16.gmra.mrb[0].mxu0 %v111
    %v266 = vpop.f32.mrb[0].mxu0
    %v267 = vadd.f32 %v134, %v266
    %v268 = vpop.f32.mrb[0].mxu0
    %v269 = vpop.f32.mrb[0].mxu0
    %v270 = vadd.f32 %v134, %v269
    %v271 = vpop.f32.mrb[0].mxu0
    %272 = vmatprep.mubr.bf16.mxu0 0
    %273 = vmatmul.mubr.bf16.gmra.mrb[0].mxu0 %v112
    %v274 = vpop.f32.mrb[0].mxu0
    %v275 = vadd.f32 %v134, %v274
    %v276 = vpop.f32.mrb[0].mxu0
    %v277 = vpop.f32.mrb[0].mxu0
    %v278 = vadd.f32 %v134, %v277
    %v279 = vpop.f32.mrb[0].mxu0
    %280 = vdwg.mxu0
    %v281 = vmul.f32 %v219, 0.5
    %v282 = vmul.f32 %v222, 0.5
    %v283 = vmul.f32 %v227, 0.5
    %v284 = vmul.f32 %v230, 0.5
    %v285 = vmul.f32 %v235, 0.5
    %v286 = vmul.f32 %v238, 0.5
    %v287 = vmul.f32 %v243, 0.5
    %v288 = vmul.f32 %v246, 0.5
    %v289 = vmul.f32 %v251, 0.5
    %v290 = vmul.f32 %v254, 0.5
    %v291 = vmul.f32 %v259, 0.5
    %v292 = vmul.f32 %v262, 0.5
    %v293 = vmul.f32 %v267, 0.5
    %v294 = vmul.f32 %v270, 0.5
    %v295 = vmul.f32 %v275, 0.5
    %v296 = vmul.f32 %v278, 0.5
    %v297 = vmul.f32 %v219, 0.70710677
    %v298 = vmul.f32 %v222, 0.70710677
    %v299 = vmul.f32 %v227, 0.70710677
    %v300 = vmul.f32 %v230, 0.70710677
    %v301 = vmul.f32 %v235, 0.70710677
    %v302 = vmul.f32 %v238, 0.70710677
    %v303 = vmul.f32 %v243, 0.70710677
    %v304 = vmul.f32 %v246, 0.70710677
    %v305 = vmul.f32 %v251, 0.70710677
    %v306 = vmul.f32 %v254, 0.70710677
    %v307 = vmul.f32 %v259, 0.70710677
    %v308 = vmul.f32 %v262, 0.70710677
    %v309 = vmul.f32 %v267, 0.70710677
    %v310 = vmul.f32 %v270, 0.70710677
    %v311 = vmul.f32 %v275, 0.70710677
    %v312 = vmul.f32 %v278, 0.70710677
    %v313 = verf.f32.pop %v297
    %v314 = verf.f32.pop %v298
    %v315 = verf.f32.pop %v299
    %v316 = verf.f32.pop %v300
    %v317 = verf.f32.pop %v301
    %v318 = verf.f32.pop %v302
    %v319 = verf.f32.pop %v303
    %v320 = verf.f32.pop %v304
    %v321 = verf.f32.pop %v305
    %v322 = verf.f32.pop %v306
    %v323 = verf.f32.pop %v307
    %v324 = verf.f32.pop %v308
    %v325 = verf.f32.pop %v309
    %v326 = verf.f32.pop %v310
    %v327 = verf.f32.pop %v311
    %v328 = verf.f32.pop %v312
    %v329 = vadd.f32 %v313, 1.0
    %v330 = vadd.f32 %v314, 1.0
    %v331 = vadd.f32 %v315, 1.0
    %v332 = vadd.f32 %v316, 1.0
    %v333 = vadd.f32 %v317, 1.0
    %v334 = vadd.f32 %v318, 1.0
    %v335 = vadd.f32 %v319, 1.0
    %v336 = vadd.f32 %v320, 1.0
    %v337 = vadd.f32 %v321, 1.0
    %v338 = vadd.f32 %v322, 1.0
    %v339 = vadd.f32 %v323, 1.0
    %v340 = vadd.f32 %v324, 1.0
    %v341 = vadd.f32 %v325, 1.0
    %v342 = vadd.f32 %v326, 1.0
    %v343 = vadd.f32 %v327, 1.0
    %v344 = vadd.f32 %v328, 1.0
    %v345 = vmul.f32 %v281, %v329
    %v346 = vmul.f32 %v282, %v330
    %v347 = vmul.f32 %v283, %v331
    %v348 = vmul.f32 %v284, %v332
    %v349 = vmul.f32 %v285, %v333
    %v350 = vmul.f32 %v286, %v334
    %v351 = vmul.f32 %v287, %v335
    %v352 = vmul.f32 %v288, %v336
    %v353 = vmul.f32 %v289, %v337
    %v354 = vmul.f32 %v290, %v338
    %v355 = vmul.f32 %v291, %v339
    %v356 = vmul.f32 %v292, %v340
    %v357 = vmul.f32 %v293, %v341
    %v358 = vmul.f32 %v294, %v342
    %v359 = vmul.f32 %v295, %v343
    %v360 = vmul.f32 %v296, %v344
    %v361 = vpack.c.bf16 %v346, %v345
    %v362 = vpack.c.bf16 %v348, %v347
    %v363 = vpack.c.bf16 %v350, %v349
    %v364 = vpack.c.bf16 %v352, %v351
    %v365 = vpack.c.bf16 %v354, %v353
    %v366 = vpack.c.bf16 %v356, %v355
    %v367 = vpack.c.bf16 %v358, %v357
    %v368 = vpack.c.bf16 %v360, %v359
    %v369 = vld [vmem:[#allocation7] sm:$0xf]
    %v370 = vld [vmem:[#allocation7 + $0x4] sm:$0xf]
    %v371 = vld [vmem:[#allocation7 + $0x8] sm:$0xf]
    %v372 = vld [vmem:[#allocation7 + $0xc] sm:$0xf]
    %v373 = vld [vmem:[#allocation7 + $0x10] sm:$0xf]
    %v374 = vld [vmem:[#allocation7 + $0x14] sm:$0xf]
    %v375 = vld [vmem:[#allocation7 + $0x18] sm:$0xf]
    %v376 = vld [vmem:[#allocation7 + $0x1c] sm:$0xf]
    %v377 = vld [vmem:[#allocation7 + $0x20] sm:$0xf]
    %v378 = vld [vmem:[#allocation7 + $0x24] sm:$0xf]
    %v379 = vld [vmem:[#allocation7 + $0x28] sm:$0xf]
    %v380 = vld [vmem:[#allocation7 + $0x2c] sm:$0xf]
    %v381 = vld [vmem:[#allocation7 + $0x30] sm:$0xf]
    %v382 = vld [vmem:[#allocation7 + $0x34] sm:$0xf]
    %v383 = vld [vmem:[#allocation7 + $0x38] sm:$0xf]
    %v384 = vld [vmem:[#allocation7 + $0x3c] sm:$0xf]
    %v385 = vld [vmem:[%s4] sm:$0x1]
    %v387 = vlaneseq
    %v388 = vshrl.u32 %v387, 7
    %v389 = vsub.s32 0, %v388
    %v390 = vrot.slane %v385, %v389
    %v408 = vunpack.c.l.b16 %v369
    %v409 = vunpack.c.l.b16 %v370
    %v410 = vunpack.c.l.b16 %v371
    %v411 = vunpack.c.l.b16 %v372
    %v412 = vunpack.c.l.b16 %v373
    %v413 = vunpack.c.l.b16 %v374
    %v414 = vunpack.c.l.b16 %v375
    %v415 = vunpack.c.l.b16 %v376
    %v416 = vunpack.c.l.b16 %v377
    %v417 = vunpack.c.l.b16 %v378
    %v418 = vunpack.c.l.b16 %v379
    %v419 = vunpack.c.l.b16 %v380
    %v420 = vunpack.c.l.b16 %v381
    %v421 = vunpack.c.l.b16 %v382
    %v422 = vunpack.c.l.b16 %v383
    %v423 = vunpack.c.l.b16 %v384
    %v424 = vpack.c.b16 %v409, %v408
    %v425 = vpack.c.b16 %v411, %v410
    %v426 = vpack.c.b16 %v413, %v412
    %v427 = vpack.c.b16 %v415, %v414
    %v428 = vpack.c.b16 %v417, %v416
    %v429 = vpack.c.b16 %v419, %v418
    %v430 = vpack.c.b16 %v421, %v420
    %v431 = vpack.c.b16 %v423, %v422
    %440 = vmatprep.subr.bf16.mxu0 0
    %441 = vmatpush1.bf16.msra.mxu0 %v424
    %442 = vmatprep.subr.bf16.mxu0 0
    %443 = vmatpush1.bf16.msra.mxu0 %v425
    %444 = vmatprep.subr.bf16.mxu0 0
    %445 = vmatpush1.bf16.msra.mxu0 %v426
    %446 = vmatprep.subr.bf16.mxu0 0
    %447 = vmatpush1.bf16.msra.mxu0 %v427
    %448 = vmatprep.subr.bf16.mxu0 0
    %449 = vmatpush1.bf16.msra.mxu0 %v428
    %450 = vmatprep.subr.bf16.mxu0 0
    %451 = vmatpush1.bf16.msra.mxu0 %v429
    %452 = vmatprep.subr.bf16.mxu0 0
    %453 = vmatpush1.bf16.msra.mxu0 %v430
    %454 = vmatprep.subr.bf16.mxu0 0
    %455 = vmatpush1.bf16.msra.mxu0 %v431
    %456 = vmatprep.subr.bf16.mxu0 0
    %457 = vmatpush1.bf16.msra.mxu0 0
    %458 = vmatprep.subr.bf16.mxu0 0
    %459 = vmatpush1.bf16.msra.mxu0 0
    %460 = vmatprep.subr.bf16.mxu0 0
    %461 = vmatpush1.bf16.msra.mxu0 0
    %462 = vmatprep.subr.bf16.mxu0 0
    %463 = vmatpush1.bf16.msra.mxu0 0
    %464 = vmatprep.subr.bf16.mxu0 0
    %465 = vmatpush1.bf16.msra.mxu0 0
    %466 = vmatprep.subr.bf16.mxu0 0
    %467 = vmatpush1.bf16.msra.mxu0 0
    %468 = vmatprep.subr.bf16.mxu0 0
    %469 = vmatpush1.bf16.msra.mxu0 0
    %470 = vmatprep.subr.bf16.mxu0 0
    %471 = vmatpush1.bf16.msra.mxu0 0
    %472 = vmatprep.mubr.bf16.mxu0 0
    %473 = vmatmul.mubr.bf16.gmra.mrb[0].mxu0 %v361
    %v474 = vpop.f32.mrb[0].mxu0
    %v475 = vadd.f32 %v390, %v474
    %v476 = vpop.f32.mrb[0].mxu0
    %v477 = vpop.f32.mrb[0].mxu0
    %v478 = vadd.f32 %v390, %v477
    %v479 = vpop.f32.mrb[0].mxu0
    %480 = vmatprep.mubr.bf16.mxu0 0
    %481 = vmatmul.mubr.bf16.gmra.mrb[0].mxu0 %v362
    %v482 = vpop.f32.mrb[0].mxu0
    %v483 = vadd.f32 %v390, %v482
    %v484 = vpop.f32.mrb[0].mxu0
    %v485 = vpop.f32.mrb[0].mxu0
    %v486 = vadd.f32 %v390, %v485
    %v487 = vpop.f32.mrb[0].mxu0
    %488 = vmatprep.mubr.bf16.mxu0 0
    %489 = vmatmul.mubr.bf16.gmra.mrb[0].mxu0 %v363
    %v490 = vpop.f32.mrb[0].mxu0
    %v491 = vadd.f32 %v390, %v490
    %v492 = vpop.f32.mrb[0].mxu0
    %v493 = vpop.f32.mrb[0].mxu0
    %v494 = vadd.f32 %v390, %v493
    %v495 = vpop.f32.mrb[0].mxu0
    %496 = vmatprep.mubr.bf16.mxu0 0
    %497 = vmatmul.mubr.bf16.gmra.mrb[0].mxu0 %v364
    %v498 = vpop.f32.mrb[0].mxu0
    %v499 = vadd.f32 %v390, %v498
    %v500 = vpop.f32.mrb[0].mxu0
    %v501 = vpop.f32.mrb[0].mxu0
    %v502 = vadd.f32 %v390, %v501
    %v503 = vpop.f32.mrb[0].mxu0
    %504 = vmatprep.mubr.bf16.mxu0 0
    %505 = vmatmul.mubr.bf16.gmra.mrb[0].mxu0 %v365
    %v506 = vpop.f32.mrb[0].mxu0
    %v507 = vadd.f32 %v390, %v506
    %v508 = vpop.f32.mrb[0].mxu0
    %v509 = vpop.f32.mrb[0].mxu0
    %v510 = vadd.f32 %v390, %v509
    %v511 = vpop.f32.mrb[0].mxu0
    %512 = vmatprep.mubr.bf16.mxu0 0
    %513 = vmatmul.mubr.bf16.gmra.mrb[0].mxu0 %v366
    %v514 = vpop.f32.mrb[0].mxu0
    %v515 = vadd.f32 %v390, %v514
    %v516 = vpop.f32.mrb[0].mxu0
    %v517 = vpop.f32.mrb[0].mxu0
    %v518 = vadd.f32 %v390, %v517
    %v519 = vpop.f32.mrb[0].mxu0
    %520 = vmatprep.mubr.bf16.mxu0 0
    %521 = vmatmul.mubr.bf16.gmra.mrb[0].mxu0 %v367
    %v522 = vpop.f32.mrb[0].mxu0
    %v523 = vadd.f32 %v390, %v522
    %v524 = vpop.f32.mrb[0].mxu0
    %v525 = vpop.f32.mrb[0].mxu0
    %v526 = vadd.f32 %v390, %v525
    %v527 = vpop.f32.mrb[0].mxu0
    %528 = vmatprep.mubr.bf16.mxu0 0
    %529 = vmatmul.mubr.bf16.gmra.mrb[0].mxu0 %v368
    %v530 = vpop.f32.mrb[0].mxu0
    %v531 = vadd.f32 %v390, %v530
    %v532 = vpop.f32.mrb[0].mxu0
    %v533 = vpop.f32.mrb[0].mxu0
    %v534 = vadd.f32 %v390, %v533
    %v535 = vpop.f32.mrb[0].mxu0
    %536 = vdwg.mxu0
    %v537 = vmul.f32 %v475, 0.5
    %v538 = vmul.f32 %v478, 0.5
    %v539 = vmul.f32 %v483, 0.5
    %v540 = vmul.f32 %v486, 0.5
    %v541 = vmul.f32 %v491, 0.5
    %v542 = vmul.f32 %v494, 0.5
    %v543 = vmul.f32 %v499, 0.5
    %v544 = vmul.f32 %v502, 0.5
    %v545 = vmul.f32 %v507, 0.5
    %v546 = vmul.f32 %v510, 0.5
    %v547 = vmul.f32 %v515, 0.5
    %v548 = vmul.f32 %v518, 0.5
    %v549 = vmul.f32 %v523, 0.5
    %v550 = vmul.f32 %v526, 0.5
    %v551 = vmul.f32 %v531, 0.5
    %v552 = vmul.f32 %v534, 0.5
    %v553 = vmul.f32 %v475, 0.70710677
    %v554 = vmul.f32 %v478, 0.70710677
    %v555 = vmul.f32 %v483, 0.70710677
    %v556 = vmul.f32 %v486, 0.70710677
    %v557 = vmul.f32 %v491, 0.70710677
    %v558 = vmul.f32 %v494, 0.70710677
    %v559 = vmul.f32 %v499, 0.70710677
    %v560 = vmul.f32 %v502, 0.70710677
    %v561 = vmul.f32 %v507, 0.70710677
    %v562 = vmul.f32 %v510, 0.70710677
    %v563 = vmul.f32 %v515, 0.70710677
    %v564 = vmul.f32 %v518, 0.70710677
    %v565 = vmul.f32 %v523, 0.70710677
    %v566 = vmul.f32 %v526, 0.70710677
    %v567 = vmul.f32 %v531, 0.70710677
    %v568 = vmul.f32 %v534, 0.70710677
    %v569 = verf.f32.pop %v553
    %v570 = verf.f32.pop %v554
    %v571 = verf.f32.pop %v555
    %v572 = verf.f32.pop %v556
    %v573 = verf.f32.pop %v557
    %v574 = verf.f32.pop %v558
    %v575 = verf.f32.pop %v559
    %v576 = verf.f32.pop %v560
    %v577 = verf.f32.pop %v561
    %v578 = verf.f32.pop %v562
    %v579 = verf.f32.pop %v563
    %v580 = verf.f32.pop %v564
    %v581 = verf.f32.pop %v565
    %v582 = verf.f32.pop %v566
    %v583 = verf.f32.pop %v567
    %v584 = verf.f32.pop %v568
    %v585 = vadd.f32 %v569, 1.0
    %v586 = vadd.f32 %v570, 1.0
    %v587 = vadd.f32 %v571, 1.0
    %v588 = vadd.f32 %v572, 1.0
    %v589 = vadd.f32 %v573, 1.0
    %v590 = vadd.f32 %v574, 1.0
    %v591 = vadd.f32 %v575, 1.0
    %v592 = vadd.f32 %v576, 1.0
    %v593 = vadd.f32 %v577, 1.0
    %v594 = vadd.f32 %v578, 1.0
    %v595 = vadd.f32 %v579, 1.0
    %v596 = vadd.f32 %v580, 1.0
    %v597 = vadd.f32 %v581, 1.0
    %v598 = vadd.f32 %v582, 1.0
    %v599 = vadd.f32 %v583, 1.0
    %v600 = vadd.f32 %v584, 1.0
    %v601 = vmul.f32 %v537, %v585
    %v602 = vmul.f32 %v538, %v586
    %v603 = vmul.f32 %v539, %v587
    %v604 = vmul.f32 %v540, %v588
    %v605 = vmul.f32 %v541, %v589
    %v606 = vmul.f32 %v542, %v590
    %v607 = vmul.f32 %v543, %v591
    %v608 = vmul.f32 %v544, %v592
    %v609 = vmul.f32 %v545, %v593
    %v610 = vmul.f32 %v546, %v594
    %v611 = vmul.f32 %v547, %v595
    %v612 = vmul.f32 %v548, %v596
    %v613 = vmul.f32 %v549, %v597
    %v614 = vmul.f32 %v550, %v598
    %v615 = vmul.f32 %v551, %v599
    %v616 = vmul.f32 %v552, %v600
    %v617 = vpack.c.bf16 %v602, %v601
    %v618 = vpack.c.bf16 %v604, %v603
    %v619 = vpack.c.bf16 %v606, %v605
    %v620 = vpack.c.bf16 %v608, %v607
    %v621 = vpack.c.bf16 %v610, %v609
    %v622 = vpack.c.bf16 %v612, %v611
    %v623 = vpack.c.bf16 %v614, %v613
    %v624 = vpack.c.bf16 %v616, %v615
    %v625 = vld [vmem:[#allocation8] sm:$0xf]
    %v626 = vld [vmem:[#allocation8 + $0x4] sm:$0xf]
    %v627 = vld [vmem:[#allocation8 + $0x8] sm:$0xf]
    %v628 = vld [vmem:[#allocation8 + $0xc] sm:$0xf]
    %v629 = vld [vmem:[#allocation8 + $0x10] sm:$0xf]
    %v630 = vld [vmem:[#allocation8 + $0x14] sm:$0xf]
    %v631 = vld [vmem:[#allocation8 + $0x18] sm:$0xf]
    %v632 = vld [vmem:[#allocation8 + $0x1c] sm:$0xf]
    %v633 = vld [vmem:[#allocation8 + $0x20] sm:$0xf]
    %v634 = vld [vmem:[#allocation8 + $0x24] sm:$0xf]
    %v635 = vld [vmem:[#allocation8 + $0x28] sm:$0xf]
    %v636 = vld [vmem:[#allocation8 + $0x2c] sm:$0xf]
    %v637 = vld [vmem:[#allocation8 + $0x30] sm:$0xf]
    %v638 = vld [vmem:[#allocation8 + $0x34] sm:$0xf]
    %v639 = vld [vmem:[#allocation8 + $0x38] sm:$0xf]
    %v640 = vld [vmem:[#allocation8 + $0x3c] sm:$0xf]
    %v641 = vld [vmem:[%s6] sm:$0x1]
    %v643 = vlaneseq
    %v644 = vshrl.u32 %v643, 7
    %v645 = vsub.s32 0, %v644
    %v646 = vrot.slane %v641, %v645
    %v664 = vunpack.c.l.b16 %v625
    %v665 = vunpack.c.l.b16 %v626
    %v666 = vunpack.c.l.b16 %v627
    %v667 = vunpack.c.l.b16 %v628
    %v668 = vunpack.c.l.b16 %v629
    %v669 = vunpack.c.l.b16 %v630
    %v670 = vunpack.c.l.b16 %v631
    %v671 = vunpack.c.l.b16 %v632
    %v672 = vunpack.c.l.b16 %v633
    %v673 = vunpack.c.l.b16 %v634
    %v674 = vunpack.c.l.b16 %v635
    %v675 = vunpack.c.l.b16 %v636
    %v676 = vunpack.c.l.b16 %v637
    %v677 = vunpack.c.l.b16 %v638
    %v678 = vunpack.c.l.b16 %v639
    %v679 = vunpack.c.l.b16 %v640
    %v680 = vpack.c.b16 %v665, %v664
    %v681 = vpack.c.b16 %v667, %v666
    %v682 = vpack.c.b16 %v669, %v668
    %v683 = vpack.c.b16 %v671, %v670
    %v684 = vpack.c.b16 %v673, %v672
    %v685 = vpack.c.b16 %v675, %v674
    %v686 = vpack.c.b16 %v677, %v676
    %v687 = vpack.c.b16 %v679, %v678
    %696 = vmatprep.subr.bf16.mxu0 0
    %697 = vmatpush1.bf16.msra.mxu0 %v680
    %698 = vmatprep.subr.bf16.mxu0 0
    %699 = vmatpush1.bf16.msra.mxu0 %v681
    %700 = vmatprep.subr.bf16.mxu0 0
    %701 = vmatpush1.bf16.msra.mxu0 %v682
    %702 = vmatprep.subr.bf16.mxu0 0
    %703 = vmatpush1.bf16.msra.mxu0 %v683
    %704 = vmatprep.subr.bf16.mxu0 0
    %705 = vmatpush1.bf16.msra.mxu0 %v684
    %706 = vmatprep.subr.bf16.mxu0 0
    %707 = vmatpush1.bf16.msra.mxu0 %v685
    %708 = vmatprep.subr.bf16.mxu0 0
    %709 = vmatpush1.bf16.msra.mxu0 %v686
    %710 = vmatprep.subr.bf16.mxu0 0
    %711 = vmatpush1.bf16.msra.mxu0 %v687
    %712 = vmatprep.subr.bf16.mxu0 0
    %713 = vmatpush1.bf16.msra.mxu0 0
    %714 = vmatprep.subr.bf16.mxu0 0
    %715 = vmatpush1.bf16.msra.mxu0 0
    %716 = vmatprep.subr.bf16.mxu0 0
    %717 = vmatpush1.bf16.msra.mxu0 0
    %718 = vmatprep.subr.bf16.mxu0 0
    %719 = vmatpush1.bf16.msra.mxu0 0
    %720 = vmatprep.subr.bf16.mxu0 0
    %721 = vmatpush1.bf16.msra.mxu0 0
    %722 = vmatprep.subr.bf16.mxu0 0
    %723 = vmatpush1.bf16.msra.mxu0 0
    %724 = vmatprep.subr.bf16.mxu0 0
    %725 = vmatpush1.bf16.msra.mxu0 0
    %726 = vmatprep.subr.bf16.mxu0 0
    %727 = vmatpush1.bf16.msra.mxu0 0
    %728 = vmatprep.mubr.bf16.mxu0 0
    %729 = vmatmul.mubr.bf16.gmra.mrb[0].mxu0 %v617
    %v730 = vpop.f32.mrb[0].mxu0
    %v731 = vadd.f32 %v646, %v730
    %v732 = vpop.f32.mrb[0].mxu0
    %v733 = vpop.f32.mrb[0].mxu0
    %v734 = vadd.f32 %v646, %v733
    %v735 = vpop.f32.mrb[0].mxu0
    %736 = vmatprep.mubr.bf16.mxu0 0
    %737 = vmatmul.mubr.bf16.gmra.mrb[0].mxu0 %v618
    %v738 = vpop.f32.mrb[0].mxu0
    %v739 = vadd.f32 %v646, %v738
    %v740 = vpop.f32.mrb[0].mxu0
    %v741 = vpop.f32.mrb[0].mxu0
    %v742 = vadd.f32 %v646, %v741
    %v743 = vpop.f32.mrb[0].mxu0
    %744 = vmatprep.mubr.bf16.mxu0 0
    %745 = vmatmul.mubr.bf16.gmra.mrb[0].mxu0 %v619
    %v746 = vpop.f32.mrb[0].mxu0
    %v747 = vadd.f32 %v646, %v746
    %v748 = vpop.f32.mrb[0].mxu0
    %v749 = vpop.f32.mrb[0].mxu0
    %v750 = vadd.f32 %v646, %v749
    %v751 = vpop.f32.mrb[0].mxu0
    %752 = vmatprep.mubr.bf16.mxu0 0
    %753 = vmatmul.mubr.bf16.gmra.mrb[0].mxu0 %v620
    %v754 = vpop.f32.mrb[0].mxu0
    %v755 = vadd.f32 %v646, %v754
    %v756 = vpop.f32.mrb[0].mxu0
    %v757 = vpop.f32.mrb[0].mxu0
    %v758 = vadd.f32 %v646, %v757
    %v759 = vpop.f32.mrb[0].mxu0
    %760 = vmatprep.mubr.bf16.mxu0 0
    %761 = vmatmul.mubr.bf16.gmra.mrb[0].mxu0 %v621
    %v762 = vpop.f32.mrb[0].mxu0
    %v763 = vadd.f32 %v646, %v762
    %v764 = vpop.f32.mrb[0].mxu0
    %v765 = vpop.f32.mrb[0].mxu0
    %v766 = vadd.f32 %v646, %v765
    %v767 = vpop.f32.mrb[0].mxu0
    %768 = vmatprep.mubr.bf16.mxu0 0
    %769 = vmatmul.mubr.bf16.gmra.mrb[0].mxu0 %v622
    %v770 = vpop.f32.mrb[0].mxu0
    %v771 = vadd.f32 %v646, %v770
    %v772 = vpop.f32.mrb[0].mxu0
    %v773 = vpop.f32.mrb[0].mxu0
    %v774 = vadd.f32 %v646, %v773
    %v775 = vpop.f32.mrb[0].mxu0
    %776 = vmatprep.mubr.bf16.mxu0 0
    %777 = vmatmul.mubr.bf16.gmra.mrb[0].mxu0 %v623
    %v778 = vpop.f32.mrb[0].mxu0
    %v779 = vadd.f32 %v646, %v778
    %v780 = vpop.f32.mrb[0].mxu0
    %v781 = vpop.f32.mrb[0].mxu0
    %v782 = vadd.f32 %v646, %v781
    %v783 = vpop.f32.mrb[0].mxu0
    %784 = vmatprep.mubr.bf16.mxu0 0
    %785 = vmatmul.mubr.bf16.gmra.mrb[0].mxu0 %v624
    %v786 = vpop.f32.mrb[0].mxu0
    %v787 = vadd.f32 %v646, %v786
    %v788 = vpop.f32.mrb[0].mxu0
    %v789 = vpop.f32.mrb[0].mxu0
    %v790 = vadd.f32 %v646, %v789
    %v791 = vpop.f32.mrb[0].mxu0
    %792 = vdwg.mxu0
    %v793 = vld [vmem:[%s7] sm:$0x1]
    %v794 = vld [vmem:[%s8] sm:$0x1]
    %795 = vadd.xlane.f32.xlu0 %v731
    %v796 = vpop.xlane.xlu0 %795
    %797 = vadd.xlane.f32.xlu0 %v734
    %v798 = vpop.xlane.xlu0 %797
    %799 = vadd.xlane.f32.xlu0 %v739
    %v800 = vpop.xlane.xlu0 %799
    %801 = vadd.xlane.f32.xlu0 %v742
    %v802 = vpop.xlane.xlu0 %801
    %803 = vadd.xlane.f32.xlu0 %v747
    %v804 = vpop.xlane.xlu0 %803
    %805 = vadd.xlane.f32.xlu0 %v750
    %v806 = vpop.xlane.xlu0 %805
    %807 = vadd.xlane.f32.xlu0 %v755
    %v808 = vpop.xlane.xlu0 %807
    %809 = vadd.xlane.f32.xlu0 %v758
    %v810 = vpop.xlane.xlu0 %809
    %811 = vadd.xlane.f32.xlu0 %v763
    %v812 = vpop.xlane.xlu0 %811
    %813 = vadd.xlane.f32.xlu0 %v766
    %v814 = vpop.xlane.xlu0 %813
    %815 = vadd.xlane.f32.xlu0 %v771
    %v816 = vpop.xlane.xlu0 %815
    %817 = vadd.xlane.f32.xlu0 %v774
    %v818 = vpop.xlane.xlu0 %817
    %819 = vadd.xlane.f32.xlu0 %v779
    %v820 = vpop.xlane.xlu0 %819
    %821 = vadd.xlane.f32.xlu0 %v782
    %v822 = vpop.xlane.xlu0 %821
    %823 = vadd.xlane.f32.xlu0 %v787
    %v824 = vpop.xlane.xlu0 %823
    %825 = vadd.xlane.f32.xlu0 %v790
    %v826 = vpop.xlane.xlu0 %825
    %v827 = vmul.f32 %v796, 0.03125
    %v828 = vmul.f32 %v798, 0.03125
    %v829 = vmul.f32 %v800, 0.03125
    %v830 = vmul.f32 %v802, 0.03125
    %v831 = vmul.f32 %v804, 0.03125
    %v832 = vmul.f32 %v806, 0.03125
    %v833 = vmul.f32 %v808, 0.03125
    %v834 = vmul.f32 %v810, 0.03125
    %v835 = vmul.f32 %v812, 0.03125
    %v836 = vmul.f32 %v814, 0.03125
    %v837 = vmul.f32 %v816, 0.03125
    %v838 = vmul.f32 %v818, 0.03125
    %v839 = vmul.f32 %v820, 0.03125
    %v840 = vmul.f32 %v822, 0.03125
    %v841 = vmul.f32 %v824, 0.03125
    %v842 = vmul.f32 %v826, 0.03125
    %v843 = vsub.f32 %v731, %v827
    %v844 = vsub.f32 %v734, %v828
    %v845 = vsub.f32 %v739, %v829
    %v846 = vsub.f32 %v742, %v830
    %v847 = vsub.f32 %v747, %v831
    %v848 = vsub.f32 %v750, %v832
    %v849 = vsub.f32 %v755, %v833
    %v850 = vsub.f32 %v758, %v834
    %v851 = vsub.f32 %v763, %v835
    %v852 = vsub.f32 %v766, %v836
    %v853 = vsub.f32 %v771, %v837
    %v854 = vsub.f32 %v774, %v838
    %v855 = vsub.f32 %v779, %v839
    %v856 = vsub.f32 %v782, %v840
    %v857 = vsub.f32 %v787, %v841
    %v858 = vsub.f32 %v790, %v842
    %v859 = vlaneseq
    %v860 = vand.u32 %v859, 127
    %vm861 = vcmp.lt.s32.totalorder %v860, 32
    %v862 = vsel %vm861, 1, 0
    %vm863 = vcmp.eq.s32.totalorder %v862, 1
    %v864 = vsel %vm863, %v843, 0.0
    %v865 = vsel %vm863, %v844, 0.0
    %v866 = vsel %vm863, %v845, 0.0
    %v867 = vsel %vm863, %v846, 0.0
    %v868 = vsel %vm863, %v847, 0.0
    %v869 = vsel %vm863, %v848, 0.0
    %v870 = vsel %vm863, %v849, 0.0
    %v871 = vsel %vm863, %v850, 0.0
    %v872 = vsel %vm863, %v851, 0.0
    %v873 = vsel %vm863, %v852, 0.0
    %v874 = vsel %vm863, %v853, 0.0
    %v875 = vsel %vm863, %v854, 0.0
    %v876 = vsel %vm863, %v855, 0.0
    %v877 = vsel %vm863, %v856, 0.0
    %v878 = vsel %vm863, %v857, 0.0
    %v879 = vsel %vm863, %v858, 0.0
    %v880 = vmul.f32 %v864, %v864
    %v881 = vmul.f32 %v865, %v865
    %v882 = vmul.f32 %v866, %v866
    %v883 = vmul.f32 %v867, %v867
    %v884 = vmul.f32 %v868, %v868
    %v885 = vmul.f32 %v869, %v869
    %v886 = vmul.f32 %v870, %v870
    %v887 = vmul.f32 %v871, %v871
    %v888 = vmul.f32 %v872, %v872
    %v889 = vmul.f32 %v873, %v873
    %v890 = vmul.f32 %v874, %v874
    %v891 = vmul.f32 %v875, %v875
    %v892 = vmul.f32 %v876, %v876
    %v893 = vmul.f32 %v877, %v877
    %v894 = vmul.f32 %v878, %v878
    %v895 = vmul.f32 %v879, %v879
    %896 = vadd.xlane.f32.xlu0 %v880
    %v897 = vpop.xlane.xlu0 %896
    %898 = vadd.xlane.f32.xlu0 %v881
    %v899 = vpop.xlane.xlu0 %898
    %900 = vadd.xlane.f32.xlu0 %v882
    %v901 = vpop.xlane.xlu0 %900
    %902 = vadd.xlane.f32.xlu0 %v883
    %v903 = vpop.xlane.xlu0 %902
    %904 = vadd.xlane.f32.xlu0 %v884
    %v905 = vpop.xlane.xlu0 %904
    %906 = vadd.xlane.f32.xlu0 %v885
    %v907 = vpop.xlane.xlu0 %906
    %908 = vadd.xlane.f32.xlu0 %v886
    %v909 = vpop.xlane.xlu0 %908
    %910 = vadd.xlane.f32.xlu0 %v887
    %v911 = vpop.xlane.xlu0 %910
    %912 = vadd.xlane.f32.xlu0 %v888
    %v913 = vpop.xlane.xlu0 %912
    %914 = vadd.xlane.f32.xlu0 %v889
    %v915 = vpop.xlane.xlu0 %914
    %916 = vadd.xlane.f32.xlu0 %v890
    %v917 = vpop.xlane.xlu0 %916
    %918 = vadd.xlane.f32.xlu0 %v891
    %v919 = vpop.xlane.xlu0 %918
    %920 = vadd.xlane.f32.xlu0 %v892
    %v921 = vpop.xlane.xlu0 %920
    %922 = vadd.xlane.f32.xlu0 %v893
    %v923 = vpop.xlane.xlu0 %922
    %924 = vadd.xlane.f32.xlu0 %v894
    %v925 = vpop.xlane.xlu0 %924
    %926 = vadd.xlane.f32.xlu0 %v895
    %v927 = vpop.xlane.xlu0 %926
    %v928 = vmul.f32 %v897, 0.03125
    %v929 = vmul.f32 %v899, 0.03125
    %v930 = vmul.f32 %v901, 0.03125
    %v931 = vmul.f32 %v903, 0.03125
    %v932 = vmul.f32 %v905, 0.03125
    %v933 = vmul.f32 %v907, 0.03125
    %v934 = vmul.f32 %v909, 0.03125
    %v935 = vmul.f32 %v911, 0.03125
    %v936 = vmul.f32 %v913, 0.03125
    %v937 = vmul.f32 %v915, 0.03125
    %v938 = vmul.f32 %v917, 0.03125
    %v939 = vmul.f32 %v919, 0.03125
    %v940 = vmul.f32 %v921, 0.03125
    %v941 = vmul.f32 %v923, 0.03125
    %v942 = vmul.f32 %v925, 0.03125
    %v943 = vmul.f32 %v927, 0.03125
    %v944 = vadd.f32 %v928, 1e-05
    %v945 = vadd.f32 %v929, 1e-05
    %v946 = vadd.f32 %v930, 1e-05
    %v947 = vadd.f32 %v931, 1e-05
    %v948 = vadd.f32 %v932, 1e-05
    %v949 = vadd.f32 %v933, 1e-05
    %v950 = vadd.f32 %v934, 1e-05
    %v951 = vadd.f32 %v935, 1e-05
    %v952 = vadd.f32 %v936, 1e-05
    %v953 = vadd.f32 %v937, 1e-05
    %v954 = vadd.f32 %v938, 1e-05
    %v955 = vadd.f32 %v939, 1e-05
    %v956 = vadd.f32 %v940, 1e-05
    %v957 = vadd.f32 %v941, 1e-05
    %v958 = vadd.f32 %v942, 1e-05
    %v959 = vadd.f32 %v943, 1e-05
    %v960 = vrsqrt.pop %v944
    %v961 = vrsqrt.pop %v945
    %v962 = vrsqrt.pop %v946
    %v963 = vrsqrt.pop %v947
    %v964 = vrsqrt.pop %v948
    %v965 = vrsqrt.pop %v949
    %v966 = vrsqrt.pop %v950
    %v967 = vrsqrt.pop %v951
    %v968 = vrsqrt.pop %v952
    %v969 = vrsqrt.pop %v953
    %v970 = vrsqrt.pop %v954
    %v971 = vrsqrt.pop %v955
    %v972 = vrsqrt.pop %v956
    %v973 = vrsqrt.pop %v957
    %v974 = vrsqrt.pop %v958
    %v975 = vrsqrt.pop %v959
    %v976 = vmul.f32 %v864, %v960
    %v977 = vmul.f32 %v865, %v961
    %v978 = vmul.f32 %v866, %v962
    %v979 = vmul.f32 %v867, %v963
    %v980 = vmul.f32 %v868, %v964
    %v981 = vmul.f32 %v869, %v965
    %v982 = vmul.f32 %v870, %v966
    %v983 = vmul.f32 %v871, %v967
    %v984 = vmul.f32 %v872, %v968
    %v985 = vmul.f32 %v873, %v969
    %v986 = vmul.f32 %v874, %v970
    %v987 = vmul.f32 %v875, %v971
    %v988 = vmul.f32 %v876, %v972
    %v989 = vmul.f32 %v877, %v973
    %v990 = vmul.f32 %v878, %v974
    %v991 = vmul.f32 %v879, %v975
    %v993 = vlaneseq
    %v994 = vshrl.u32 %v993, 7
    %v995 = vsub.s32 0, %v994
    %v996 = vrot.slane %v793, %v995
    %v998 = vmul.f32 %v976, %v996
    %v999 = vmul.f32 %v977, %v996
    %v1000 = vmul.f32 %v978, %v996
    %v1001 = vmul.f32 %v979, %v996
    %v1002 = vmul.f32 %v980, %v996
    %v1003 = vmul.f32 %v981, %v996
    %v1004 = vmul.f32 %v982, %v996
    %v1005 = vmul.f32 %v983, %v996
    %v1006 = vmul.f32 %v984, %v996
    %v1007 = vmul.f32 %v985, %v996
    %v1008 = vmul.f32 %v986, %v996
    %v1009 = vmul.f32 %v987, %v996
    %v1010 = vmul.f32 %v988, %v996
    %v1011 = vmul.f32 %v989, %v996
    %v1012 = vmul.f32 %v990, %v996
    %v1013 = vmul.f32 %v991, %v996
    %v1015 = vlaneseq
    %v1016 = vshrl.u32 %v1015, 7
    %v1017 = vsub.s32 0, %v1016
    %v1018 = vrot.slane %v794, %v1017
    %v1020 = vadd.f32 %v998, %v1018
    %v1021 = vadd.f32 %v999, %v1018
    %v1022 = vadd.f32 %v1000, %v1018
    %v1023 = vadd.f32 %v1001, %v1018
    %v1024 = vadd.f32 %v1002, %v1018
    %v1025 = vadd.f32 %v1003, %v1018
    %v1026 = vadd.f32 %v1004, %v1018
    %v1027 = vadd.f32 %v1005, %v1018
    %v1028 = vadd.f32 %v1006, %v1018
    %v1029 = vadd.f32 %v1007, %v1018
    %v1030 = vadd.f32 %v1008, %v1018
    %v1031 = vadd.f32 %v1009, %v1018
    %v1032 = vadd.f32 %v1010, %v1018
    %v1033 = vadd.f32 %v1011, %v1018
    %v1034 = vadd.f32 %v1012, %v1018
    %v1035 = vadd.f32 %v1013, %v1018
    %1036 = vst [vmem:[#allocation10] sm:$0xff] %v1020
    %1037 = vst [vmem:[#allocation10 + $0x8] sm:$0xff] %v1021
    %1038 = vst [vmem:[#allocation10 + $0x10] sm:$0xff] %v1022
    %1039 = vst [vmem:[#allocation10 + $0x18] sm:$0xff] %v1023
    %1040 = vst [vmem:[#allocation10 + $0x20] sm:$0xff] %v1024
    %1041 = vst [vmem:[#allocation10 + $0x28] sm:$0xff] %v1025
    %1042 = vst [vmem:[#allocation10 + $0x30] sm:$0xff] %v1026
    %1043 = vst [vmem:[#allocation10 + $0x38] sm:$0xff] %v1027
    %1044 = vst [vmem:[#allocation10 + $0x40] sm:$0xff] %v1028
    %1045 = vst [vmem:[#allocation10 + $0x48] sm:$0xff] %v1029
    %1046 = vst [vmem:[#allocation10 + $0x50] sm:$0xff] %v1030
    %1047 = vst [vmem:[#allocation10 + $0x58] sm:$0xff] %v1031
    %1048 = vst [vmem:[#allocation10 + $0x60] sm:$0xff] %v1032
    %1049 = vst [vmem:[#allocation10 + $0x68] sm:$0xff] %v1033
    %1050 = vst [vmem:[#allocation10 + $0x70] sm:$0xff] %v1034
    %1051 = vst [vmem:[#allocation10 + $0x78] sm:$0xff] %v1035
    // Predicated region
    $region54: #{tpu_custom_call.1} parent=1 // pred_check
      _
    $region55: #{tpu_custom_call.1} parent=1 // pred_check_branch
      %1053 = sbr.rel (0) target = $region57
    $region56: #{tpu_custom_call.1} parent=1 // pred_region
      %s1055 = ssub.s32 2048, 2048
      %1056 = vsyncadd [#allocation4], %s1055
      %s1057 = sshll.u32 [#allocation10], 4
      %s1058 = int_to_ptr.vmem [resolvable:$true] %s1057
      %1063 = dma.vmem_to_hbm [thread:$0]  %s1058, 2048, %s9, [#allocation4], 128, 128, 8
    $region57: #{tpu_custom_call.1} parent=1 // pred_fallthru
      _
    // Predicated region
    $region58: #{tpu_custom_call.1} parent=1 // pred_check
      _
    $region59: #{tpu_custom_call.1} parent=1 // pred_check_branch
      %1065 = sbr.rel (0) target = $region61
    $region60: #{tpu_custom_call.1} parent=1 // pred_region
      %1066 = dma.done [#allocation4], 2048
    $region61: #{tpu_custom_call.1} parent=1 // pred_fallthru
      _
    %1067 = vsyncpa [#allocation3], 1
    %1068 = vsyncpa [#allocation6], 1
    %1069 = vsyncpa [#allocation9], 1
    %1070 = vsyncpa [#allocation4], 1

</llo_original>
